<compile_context>
chip_gen: v6e
topology: v6e:2x2x1
jax: 0.10.0
libtpu: 0.0.40
codegen_flags: <defaults>
</compile_context>

<pallas_src>
import functools

import jax
import jax.numpy as jnp
from jax.experimental import pallas as pl
from jax.experimental.pallas import tpu as pltpu


def _round_up(x, m):
    return (x + m - 1) // m * m


def detect_num_tensorcores():
    """Best-effort detection of TensorCores per chip (2 on v7x, 1 on v5e/v6e)."""
    try:
        dev = jax.devices()[0]
        n = getattr(dev, "num_cores", None)
        if n is None:
            kind = str(getattr(dev, "device_kind", "")).lower()
            n = 2 if "v7" in kind else 1
        return max(1, int(n))
    except Exception:
        return 1


def prepare_params(params):
    """Cast weights to bf16 / biases to f32 once, outside the jitted forward."""
    out = {}
    for i in range(1, 5):
        out[f"w{i}"] = jnp.asarray(params[f"w{i}"], dtype=jnp.bfloat16)
        out[f"b{i}"] = jnp.asarray(params[f"b{i}"], dtype=jnp.float32)
    return out


def _mlp4_kernel(x_ref, w1_ref, b1_ref, w2_ref, b2_ref,
                 w3_ref, b3_ref, w4_ref, b4_ref, o_ref):
    # f32 tile from HBM, cast to bf16 in-register (saves a separate wrapper-side HBM pass).
    x = x_ref[...].astype(jnp.bfloat16)

    # encode: fc1 -> relu -> fc2 -> relu   (bf16 MXU inputs, f32 accumulation)
    h1 = jnp.dot(x, w1_ref[...], preferred_element_type=jnp.float32) + b1_ref[...]
    h1 = jnp.maximum(h1, 0.0).astype(jnp.bfloat16)
    h2 = jnp.dot(h1, w2_ref[...], preferred_element_type=jnp.float32) + b2_ref[...]
    h2 = jnp.maximum(h2, 0.0).astype(jnp.bfloat16)

    # decode: fc3 -> relu -> fc4 -> sigmoid
    h3 = jnp.dot(h2, w3_ref[...], preferred_element_type=jnp.float32) + b3_ref[...]
    h3 = jnp.maximum(h3, 0.0).astype(jnp.bfloat16)
    z = jnp.dot(h3, w4_ref[...], preferred_element_type=jnp.float32) + b4_ref[...]

    # sigmoid(z) = 0.5 * tanh(0.5 * z) + 0.5: single EUP op + cheap VPU FMA, exact, in [0,1].
    o_ref[...] = (0.5 * jnp.tanh(0.5 * z) + 0.5).astype(o_ref.dtype)


def _choose_block(B, block_b, num_tensorcores):
    if B <= block_b:
        # Whole batch fits in one tile. Only split it in two when the chip actually has
        # two TensorCores to shard the grid across (v7x); on v5e/v6e the extra grid step
        # just adds per-step overhead.
        if num_tensorcores >= 2 and B >= 32:
            return _round_up(pl.cdiv(B, 2), 16)
        return B  # block == full array dim -> always a legal block shape
    return block_b


@functools.partial(jax.jit, static_argnames=("block_b", "out_dtype", "num_tensorcores"))
def autoencoder_mlp4(x, params, block_b=1024, out_dtype=jnp.float32, num_tensorcores=1):
    """x: (B, n_input) float32. params: (in,out)-layout weights, (1,out) biases.

    block_b: requested batch tile (multiple of 16). Sweep per generation:
      v5e -> 256-512, v6e -> 1024-2048, v7x -> ~1024 (64 MiB VMEM/TC).
    out_dtype: jnp.float32 (default) or jnp.bfloat16 (halves the output HBM stream).
    """
    assert block_b > 0 and block_b % 16 == 0, "block_b must be a positive multiple of 16"
    B, n_in = x.shape

    # No-op casts if params were already prepared via prepare_params().
    w1 = params["w1"].astype(jnp.bfloat16)
    w2 = params["w2"].astype(jnp.bfloat16)
    w3 = params["w3"].astype(jnp.bfloat16)
    w4 = params["w4"].astype(jnp.bfloat16)
    b1 = params["b1"].astype(jnp.float32)
    b2 = params["b2"].astype(jnp.float32)
    b3 = params["b3"].astype(jnp.float32)
    b4 = params["b4"].astype(jnp.float32)
    n_out = w4.shape[1]

    blk = _choose_block(B, block_b, num_tensorcores)
    grid = (pl.cdiv(B, blk),)  # ragged last block: Pallas masks its loads/stores

    def full(shape):
        # Weights / biases: same full block for every batch tile -> fetched once,
        # resident in VMEM across the whole grid.
        return pl.BlockSpec(shape, lambda i: tuple(0 for _ in shape))

    out = pl.pallas_call(
        _mlp4_kernel,
        out_shape=jax.ShapeDtypeStruct((B, n_out), out_dtype),
        grid_spec=pltpu.PrefetchScalarGridSpec(
            num_scalar_prefetch=0,
            grid=grid,
            in_specs=[
                pl.BlockSpec((blk, n_in), lambda i: (i, 0)),  # x tile (f32, cast in-kernel)
                full(w1.shape), full(b1.shape),
                full(w2.shape), full(b2.shape),
                full(w3.shape), full(b3.shape),
                full(w4.shape), full(b4.shape),
            ],
            out_specs=pl.BlockSpec((blk, n_out), lambda i: (i, 0)),
        ),
        compiler_params=pltpu.CompilerParams(
            dimension_semantics=("parallel",),
            vmem_limit_bytes=56 * 1024 * 1024,
        ),
    )(x, w1, b1, w2, b2, w3, b3, w4, b4)

    return out


def init_params(key, n_input=784, n_bottleneck=8, n_output=784):
    """Deterministic torch.nn.Linear-style init (U[-1/sqrt(fan_in), 1/sqrt(fan_in)])."""
    n2 = 392
    dims = [(n_input, n2), (n2, n_bottleneck), (n_bottleneck, n2), (n2, n_output)]
    params = {}
    keys = jax.random.split(key, 2 * len(dims))
    for idx, (fan_in, fan_out) in enumerate(dims):
        bound = 1.0 / (fan_in ** 0.5)
        w = jax.random.uniform(keys[2 * idx], (fan_in, fan_out),
                               minval=-bound, maxval=bound, dtype=jnp.float32)
        b = jax.random.uniform(keys[2 * idx + 1], (1, fan_out),
                               minval=-bound, maxval=bound, dtype=jnp.float32)
        params[f"w{idx + 1}"] = w
        params[f"b{idx + 1}"] = b
    return params


def reference_forward_f32(x, params):
    h = jnp.maximum(x @ params["w1"] + params["b1"], 0.0)
    h = jnp.maximum(h @ params["w2"] + params["b2"], 0.0)
    h = jnp.maximum(h @ params["w3"] + params["b3"], 0.0)
    return jax.nn.sigmoid(h @ params["w4"] + params["b4"])


def reference_forward_bf16(x, params):
    """Same bf16-in / f32-accumulate numerics as the kernel, in plain JAX."""
    def lin(h, w, b):
        return jnp.dot(h.astype(jnp.bfloat16), w.astype(jnp.bfloat16),
                       preferred_element_type=jnp.float32) + jnp.asarray(b, jnp.float32)
    h = jnp.maximum(lin(x, params["w1"], params["b1"]), 0.0)
    h = jnp.maximum(lin(h, params["w2"], params["b2"]), 0.0)
    h = jnp.maximum(lin(h, params["w3"], params["b3"]), 0.0)
    return jax.nn.sigmoid(lin(h, params["w4"], params["b4"]))


if __name__ == "__main__":
    key = jax.random.PRNGKey(0)
    k_params, k_x, k_x2 = jax.random.split(key, 3)

    n_input, n_bottleneck, n_output = 784, 8, 784
    batch = 16

    params = init_params(k_params, n_input, n_bottleneck, n_output)
    prepared = prepare_params(params)          # one-time weight/bias cast (outside jit)
    n_cores = detect_num_tensorcores()

    # --- main check: single-tile batch ---
    x = jax.random.uniform(k_x, (batch, n_input), dtype=jnp.float32)
    out = autoencoder_mlp4(x, prepared, block_b=1024, num_tensorcores=n_cores)
    out = jax.block_until_ready(out)
    assert out.shape == (batch, n_output)
    assert out.dtype == jnp.float32

    ref_bf16 = reference_forward_bf16(x, params)
    assert jnp.allclose(out, ref_bf16, atol=1e-2, rtol=1e-2), "mismatch vs bf16 reference"
    ref_f32 = reference_forward_f32(x, params)
    assert jnp.allclose(out, ref_f32, atol=5e-2, rtol=5e-2), "mismatch vs f32 reference"

    # --- ragged-grid check: B not a multiple of blk (exercises the masked last block) ---
    batch2 = 20
    x2 = jax.random.uniform(k_x2, (batch2, n_input), dtype=jnp.float32)
    out2 = autoencoder_mlp4(x2, prepared, block_b=16, num_tensorcores=n_cores)
    out2 = jax.block_until_ready(out2)
    assert out2.shape == (batch2, n_output)
    ref2 = reference_forward_bf16(x2, params)
    assert jnp.allclose(out2, ref2, atol=1e-2, rtol=1e-2), "mismatch on ragged batch"

    # --- bf16-output path check ---
    out_bf16 = autoencoder_mlp4(x, prepared, block_b=1024,
                                out_dtype=jnp.bfloat16, num_tensorcores=n_cores)
    out_bf16 = jax.block_until_ready(out_bf16)
    assert out_bf16.dtype == jnp.bfloat16
    assert jnp.allclose(out_bf16.astype(jnp.float32), ref_bf16, atol=2e-2, rtol=2e-2), \
        "mismatch on bf16-output path"

    print("KERNEL_OK")
</pallas_src>

<mosaic_0001>
module attributes {stable_mosaic.version = 11 : i64} {
  func.func @_mlp4_kernel(%arg0: i32, %arg1: memref<16x784xf32, #tpu.memory_space<vmem>>, %arg2: memref<784x392xbf16, #tpu.memory_space<vmem>>, %arg3: memref<1x392xf32, #tpu.memory_space<vmem>>, %arg4: memref<392x8xbf16, #tpu.memory_space<vmem>>, %arg5: memref<1x8xf32, #tpu.memory_space<vmem>>, %arg6: memref<8x392xbf16, #tpu.memory_space<vmem>>, %arg7: memref<1x392xf32, #tpu.memory_space<vmem>>, %arg8: memref<392x784xbf16, #tpu.memory_space<vmem>>, %arg9: memref<1x784xf32, #tpu.memory_space<vmem>>, %arg10: memref<16x784xf32, #tpu.memory_space<vmem>>) attributes {dimension_semantics = [#tpu.dimension_semantics<parallel>], iteration_bounds = array<i64: 1>, scalar_prefetch = 0 : i64, scratch_operands = 0 : i64, tpu.core_type = #tpu.core_type<tc>, window_params = [{transform_indices = @transform_0, window_bounds = array<i64: 16, 784>}, {pipeline_mode = #tpu.pipeline_mode<synchronous>, transform_indices = @transform_1, window_bounds = array<i64: 784, 392>}, {pipeline_mode = #tpu.pipeline_mode<synchronous>, transform_indices = @transform_2, window_bounds = array<i64: 1, 392>}, {pipeline_mode = #tpu.pipeline_mode<synchronous>, transform_indices = @transform_3, window_bounds = array<i64: 392, 8>}, {pipeline_mode = #tpu.pipeline_mode<synchronous>, transform_indices = @transform_4, window_bounds = array<i64: 1, 8>}, {pipeline_mode = #tpu.pipeline_mode<synchronous>, transform_indices = @transform_5, window_bounds = array<i64: 8, 392>}, {pipeline_mode = #tpu.pipeline_mode<synchronous>, transform_indices = @transform_6, window_bounds = array<i64: 1, 392>}, {pipeline_mode = #tpu.pipeline_mode<synchronous>, transform_indices = @transform_7, window_bounds = array<i64: 392, 784>}, {pipeline_mode = #tpu.pipeline_mode<synchronous>, transform_indices = @transform_8, window_bounds = array<i64: 1, 784>}, {transform_indices = @transform_9, window_bounds = array<i64: 16, 784>}]} {
    %c0 = arith.constant 0 : index
    %c0_0 = arith.constant 0 : index
    %0 = vector.load %arg1[%c0, %c0_0] : memref<16x784xf32, #tpu.memory_space<vmem>>, vector<16x784xf32>
    %1 = arith.truncf %0 : vector<16x784xf32> to vector<16x784xbf16>
    %c0_1 = arith.constant 0 : index
    %c0_2 = arith.constant 0 : index
    %2 = vector.load %arg2[%c0_1, %c0_2] : memref<784x392xbf16, #tpu.memory_space<vmem>>, vector<784x392xbf16>
    %cst = arith.constant dense<0.000000e+00> : vector<16x392xf32>
    %3 = tpu.matmul %1, %2, %cst {dimension_numbers = #tpu.dot_dimension_numbers<[1], [0], [0], [1], [0, 0, 1, 1], [], []>} : vector<16x784xbf16>, vector<784x392xbf16>, vector<16x392xf32> -> vector<16x392xf32>
    %c0_3 = arith.constant 0 : index
    %c0_4 = arith.constant 0 : index
    %4 = vector.load %arg3[%c0_3, %c0_4] : memref<1x392xf32, #tpu.memory_space<vmem>>, vector<1x392xf32>
    %5 = vector.broadcast %4 : vector<1x392xf32> to vector<16x392xf32>
    %6 = arith.addf %3, %5 : vector<16x392xf32>
    %cst_5 = arith.constant 0.000000e+00 : f32
    %7 = vector.broadcast %cst_5 : f32 to vector<16x392xf32>
    %8 = arith.maximumf %6, %7 : vector<16x392xf32>
    %9 = arith.truncf %8 : vector<16x392xf32> to vector<16x392xbf16>
    %c0_6 = arith.constant 0 : index
    %c0_7 = arith.constant 0 : index
    %10 = vector.load %arg4[%c0_6, %c0_7] : memref<392x8xbf16, #tpu.memory_space<vmem>>, vector<392x8xbf16>
    %cst_8 = arith.constant dense<0.000000e+00> : vector<16x8xf32>
    %11 = tpu.matmul %9, %10, %cst_8 {dimension_numbers = #tpu.dot_dimension_numbers<[1], [0], [0], [1], [0, 0, 1, 1], [], []>} : vector<16x392xbf16>, vector<392x8xbf16>, vector<16x8xf32> -> vector<16x8xf32>
    %c0_9 = arith.constant 0 : index
    %c0_10 = arith.constant 0 : index
    %12 = vector.load %arg5[%c0_9, %c0_10] : memref<1x8xf32, #tpu.memory_space<vmem>>, vector<1x8xf32>
    %13 = vector.broadcast %12 : vector<1x8xf32> to vector<16x8xf32>
    %14 = arith.addf %11, %13 : vector<16x8xf32>
    %cst_11 = arith.constant 0.000000e+00 : f32
    %15 = vector.broadcast %cst_11 : f32 to vector<16x8xf32>
    %16 = arith.maximumf %14, %15 : vector<16x8xf32>
    %17 = arith.truncf %16 : vector<16x8xf32> to vector<16x8xbf16>
    %c0_12 = arith.constant 0 : index
    %c0_13 = arith.constant 0 : index
    %18 = vector.load %arg6[%c0_12, %c0_13] : memref<8x392xbf16, #tpu.memory_space<vmem>>, vector<8x392xbf16>
    %cst_14 = arith.constant dense<0.000000e+00> : vector<16x392xf32>
    %19 = tpu.matmul %17, %18, %cst_14 {dimension_numbers = #tpu.dot_dimension_numbers<[1], [0], [0], [1], [0, 0, 1, 1], [], []>} : vector<16x8xbf16>, vector<8x392xbf16>, vector<16x392xf32> -> vector<16x392xf32>
    %c0_15 = arith.constant 0 : index
    %c0_16 = arith.constant 0 : index
    %20 = vector.load %arg7[%c0_15, %c0_16] : memref<1x392xf32, #tpu.memory_space<vmem>>, vector<1x392xf32>
    %21 = vector.broadcast %20 : vector<1x392xf32> to vector<16x392xf32>
    %22 = arith.addf %19, %21 : vector<16x392xf32>
    %cst_17 = arith.constant 0.000000e+00 : f32
    %23 = vector.broadcast %cst_17 : f32 to vector<16x392xf32>
    %24 = arith.maximumf %22, %23 : vector<16x392xf32>
    %25 = arith.truncf %24 : vector<16x392xf32> to vector<16x392xbf16>
    %c0_18 = arith.constant 0 : index
    %c0_19 = arith.constant 0 : index
    %26 = vector.load %arg8[%c0_18, %c0_19] : memref<392x784xbf16, #tpu.memory_space<vmem>>, vector<392x784xbf16>
    %cst_20 = arith.constant dense<0.000000e+00> : vector<16x784xf32>
    %27 = tpu.matmul %25, %26, %cst_20 {dimension_numbers = #tpu.dot_dimension_numbers<[1], [0], [0], [1], [0, 0, 1, 1], [], []>} : vector<16x392xbf16>, vector<392x784xbf16>, vector<16x784xf32> -> vector<16x784xf32>
    %c0_21 = arith.constant 0 : index
    %c0_22 = arith.constant 0 : index
    %28 = vector.load %arg9[%c0_21, %c0_22] : memref<1x784xf32, #tpu.memory_space<vmem>>, vector<1x784xf32>
    %29 = vector.broadcast %28 : vector<1x784xf32> to vector<16x784xf32>
    %30 = arith.addf %27, %29 : vector<16x784xf32>
    %cst_23 = arith.constant 5.000000e-01 : f32
    %31 = vector.broadcast %cst_23 : f32 to vector<16x784xf32>
    %32 = arith.mulf %31, %30 : vector<16x784xf32>
    %33 = math.tanh %32 : vector<16x784xf32>
    %cst_24 = arith.constant 5.000000e-01 : f32
    %34 = vector.broadcast %cst_24 : f32 to vector<16x784xf32>
    %35 = arith.mulf %34, %33 : vector<16x784xf32>
    %cst_25 = arith.constant 5.000000e-01 : f32
    %36 = vector.broadcast %cst_25 : f32 to vector<16x784xf32>
    %37 = arith.addf %35, %36 : vector<16x784xf32>
    %c0_26 = arith.constant 0 : index
    %c0_27 = arith.constant 0 : index
    %38 = vector.load %arg10[%c0_26, %c0_27] : memref<16x784xf32, #tpu.memory_space<vmem>>, vector<16x784xf32>
    tpu.vector_store %arg10[%c0_26, %c0_27], %37 {strides = array<i32>} : memref<16x784xf32, #tpu.memory_space<vmem>>, vector<16x784xf32>,
    return
  }
  func.func @transform_0(%arg0: i32) -> (i32, i32) {
    %c0_i32 = arith.constant 0 : i32
    %c0_i32_0 = arith.constant 0 : i32
    return %arg0, %c0_i32 : i32, i32
  }
  func.func @transform_1(%arg0: i32) -> (i32, i32) {
    %c0_i32 = arith.constant 0 : i32
    %c0_i32_0 = arith.constant 0 : i32
    %c0_i32_1 = arith.constant 0 : i32
    return %c0_i32, %c0_i32_0 : i32, i32
  }
  func.func @transform_2(%arg0: i32) -> (i32, i32) {
    %c0_i32 = arith.constant 0 : i32
    %c0_i32_0 = arith.constant 0 : i32
    %c0_i32_1 = arith.constant 0 : i32
    return %c0_i32, %c0_i32_0 : i32, i32
  }
  func.func @transform_3(%arg0: i32) -> (i32, i32) {
    %c0_i32 = arith.constant 0 : i32
    %c0_i32_0 = arith.constant 0 : i32
    %c0_i32_1 = arith.constant 0 : i32
    return %c0_i32, %c0_i32_0 : i32, i32
  }
  func.func @transform_4(%arg0: i32) -> (i32, i32) {
    %c0_i32 = arith.constant 0 : i32
    %c0_i32_0 = arith.constant 0 : i32
    %c0_i32_1 = arith.constant 0 : i32
    return %c0_i32, %c0_i32_0 : i32, i32
  }
  func.func @transform_5(%arg0: i32) -> (i32, i32) {
    %c0_i32 = arith.constant 0 : i32
    %c0_i32_0 = arith.constant 0 : i32
    %c0_i32_1 = arith.constant 0 : i32
    return %c0_i32, %c0_i32_0 : i32, i32
  }
  func.func @transform_6(%arg0: i32) -> (i32, i32) {
    %c0_i32 = arith.constant 0 : i32
    %c0_i32_0 = arith.constant 0 : i32
    %c0_i32_1 = arith.constant 0 : i32
    return %c0_i32, %c0_i32_0 : i32, i32
  }
  func.func @transform_7(%arg0: i32) -> (i32, i32) {
    %c0_i32 = arith.constant 0 : i32
    %c0_i32_0 = arith.constant 0 : i32
    %c0_i32_1 = arith.constant 0 : i32
    return %c0_i32, %c0_i32_0 : i32, i32
  }
  func.func @transform_8(%arg0: i32) -> (i32, i32) {
    %c0_i32 = arith.constant 0 : i32
    %c0_i32_0 = arith.constant 0 : i32
    %c0_i32_1 = arith.constant 0 : i32
    return %c0_i32, %c0_i32_0 : i32, i32
  }
  func.func @transform_9(%arg0: i32) -> (i32, i32) {
    %c0_i32 = arith.constant 0 : i32
    %c0_i32_0 = arith.constant 0 : i32
    return %arg0, %c0_i32 : i32, i32
  }
}

</mosaic_0001>

<llo_original>
// kernel: autoencoder_mlp4.1
$region0: #{autoencoder_mlp4.1}
  #allocation0 [shape = 'u32[]', space=smem, size = 0x4, offset = 0x4, fixed_abs, tag = 'smem constant byte address 0x4 - core index']
  #allocation1 [shape = 'u32[144,128]{1,0:T(1,128)}', space=vmem, size = 0x12000, scoped, tag = 'internal scratch']
  %s0 = inlined_call_operand.vmem [shape: f32[16,784], index: 0, kind: input, shape index: {}]
  %s1 = inlined_call_operand.vmem [shape: bf16[784,392], index: 1, kind: input, shape index: {}]
  %s2 = inlined_call_operand.vmem [shape: f32[1,392], index: 2, kind: input, shape index: {}]
  %s3 = inlined_call_operand.vmem [shape: bf16[392,8], index: 3, kind: input, shape index: {}]
  %s4 = inlined_call_operand.vmem [shape: f32[1,8], index: 4, kind: input, shape index: {}]
  %s5 = inlined_call_operand.vmem [shape: bf16[8,392], index: 5, kind: input, shape index: {}]
  %s6 = inlined_call_operand.vmem [shape: f32[1,392], index: 6, kind: input, shape index: {}]
  %s7 = inlined_call_operand.vmem [shape: bf16[392,784], index: 7, kind: input, shape index: {}]
  %s8 = inlined_call_operand.vmem [shape: f32[1,784], index: 8, kind: input, shape index: {}]
  %s9 = inlined_call_operand.hbm [shape: f32[16,784], index: 9, kind: output, shape index: {}]
  %s10 = sld [smem:[#allocation0]]
  $region46: #{autoencoder_mlp4.1} parent=0
    _
  %s12 = ssub.s32 1, %s10
  %s13 = scalar_select 0, %s12, %s10
  $region1: #{autoencoder_mlp4.1} parent=0
    #allocation2 [shape = 'u8[57344]{0}', space=vmem, size = 0xe000, scoped, tag = 'output window, operand 0, single buffered']
    #allocation3 [shape = 's32[1]{0}', space=sflag, size = 0x4, scoped, tag = 'scoped memory for autoencoder_mlp4.1']
    %14 = vsyncpa [#allocation3], 0
    // Predicated region
    $region2: #{autoencoder_mlp4.1} parent=1 // pred_check
      _
    $region3: #{autoencoder_mlp4.1} parent=1 // pred_check_branch
      %16 = sbr.rel (0) target = $region5
    $region4: #{autoencoder_mlp4.1} parent=1 // pred_region
      _
    $region5: #{autoencoder_mlp4.1} parent=1 // pred_fallthru
      _
    // Predicated region
    $region6: #{autoencoder_mlp4.1} parent=1 // pred_check
      _
    $region7: #{autoencoder_mlp4.1} parent=1 // pred_check_branch
      %18 = sbr.rel (0) target = $region9
    $region8: #{autoencoder_mlp4.1} parent=1 // pred_region
      _
    $region9: #{autoencoder_mlp4.1} parent=1 // pred_fallthru
      _
    // Predicated region
    $region10: #{autoencoder_mlp4.1} parent=1 // pred_check
      _
    $region11: #{autoencoder_mlp4.1} parent=1 // pred_check_branch
      %20 = sbr.rel (0) target = $region13
    $region12: #{autoencoder_mlp4.1} parent=1 // pred_region
      _
    $region13: #{autoencoder_mlp4.1} parent=1 // pred_fallthru
      _
    // Predicated region
    $region14: #{autoencoder_mlp4.1} parent=1 // pred_check
      _
    $region15: #{autoencoder_mlp4.1} parent=1 // pred_check_branch
      %22 = sbr.rel (0) target = $region17
    $region16: #{autoencoder_mlp4.1} parent=1 // pred_region
      _
    $region17: #{autoencoder_mlp4.1} parent=1 // pred_fallthru
      _
    // Predicated region
    $region18: #{autoencoder_mlp4.1} parent=1 // pred_check
      _
    $region19: #{autoencoder_mlp4.1} parent=1 // pred_check_branch
      %24 = sbr.rel (0) target = $region21
    $region20: #{autoencoder_mlp4.1} parent=1 // pred_region
      _
    $region21: #{autoencoder_mlp4.1} parent=1 // pred_fallthru
      _
    // Predicated region
    $region22: #{autoencoder_mlp4.1} parent=1 // pred_check
      _
    $region23: #{autoencoder_mlp4.1} parent=1 // pred_check_branch
      %26 = sbr.rel (0) target = $region25
    $region24: #{autoencoder_mlp4.1} parent=1 // pred_region
      _
    $region25: #{autoencoder_mlp4.1} parent=1 // pred_fallthru
      _
    // Predicated region
    $region26: #{autoencoder_mlp4.1} parent=1 // pred_check
      _
    $region27: #{autoencoder_mlp4.1} parent=1 // pred_check_branch
      %28 = sbr.rel (0) target = $region29
    $region28: #{autoencoder_mlp4.1} parent=1 // pred_region
      _
    $region29: #{autoencoder_mlp4.1} parent=1 // pred_fallthru
      _
    // Predicated region
    $region30: #{autoencoder_mlp4.1} parent=1 // pred_check
      _
    $region31: #{autoencoder_mlp4.1} parent=1 // pred_check_branch
      %30 = sbr.rel (0) target = $region33
    $region32: #{autoencoder_mlp4.1} parent=1 // pred_region
      _
    $region33: #{autoencoder_mlp4.1} parent=1 // pred_fallthru
      _
    // Predicated region
    $region34: #{autoencoder_mlp4.1} parent=1 // pred_check
      _
    $region35: #{autoencoder_mlp4.1} parent=1 // pred_check_branch
      %32 = sbr.rel (0) target = $region37
    $region36: #{autoencoder_mlp4.1} parent=1 // pred_region
      _
    $region37: #{autoencoder_mlp4.1} parent=1 // pred_fallthru
      _
    %v34 = vld [vmem:[%s0] sm:$0xff]
    %v35 = vld [vmem:[%s0 + $0x8] sm:$0xff]
    %v36 = vld [vmem:[%s0 + $0x10] sm:$0xff]
    %v37 = vld [vmem:[%s0 + $0x18] sm:$0xff]
    %v38 = vld [vmem:[%s0 + $0x20] sm:$0xff]
    %v39 = vld [vmem:[%s0 + $0x28] sm:$0xff]
    %v40 = vld [vmem:[%s0 + $0x30] sm:$0xff]
    %v41 = vld [vmem:[%s0 + $0x38] sm:$0xff]
    %v42 = vld [vmem:[%s0 + $0x40] sm:$0xff]
    %v43 = vld [vmem:[%s0 + $0x48] sm:$0xff]
    %v44 = vld [vmem:[%s0 + $0x50] sm:$0xff]
    %v45 = vld [vmem:[%s0 + $0x58] sm:$0xff]
    %v46 = vld [vmem:[%s0 + $0x60] sm:$0xff]
    %v47 = vld [vmem:[%s0 + $0x68] sm:$0xff]
    %v48 = vpack.c.bf16 %v41, %v34
    %v49 = vpack.c.bf16 %v42, %v35
    %v50 = vpack.c.bf16 %v43, %v36
    %v51 = vpack.c.bf16 %v44, %v37
    %v52 = vpack.c.bf16 %v45, %v38
    %v53 = vpack.c.bf16 %v46, %v39
    %v54 = vpack.c.bf16 %v47, %v40
    %v55 = vld [vmem:[%s1] sm:$0xff]
    %v56 = vld [vmem:[%s1 + $0x8] sm:$0xff]
    %v57 = vld [vmem:[%s1 + $0x10] sm:$0xff]
    %v58 = vld [vmem:[%s1 + $0x18] sm:$0xff]
    %v59 = vld [vmem:[%s1 + $0x20] sm:$0xff]
    %v60 = vld [vmem:[%s1 + $0x28] sm:$0xff]
    %v61 = vld [vmem:[%s1 + $0x30] sm:$0xff]
    %v62 = vld [vmem:[%s1 + $0x38] sm:$0xff]
    %v63 = vld [vmem:[%s1 + $0x40] sm:$0xff]
    %v64 = vld [vmem:[%s1 + $0x48] sm:$0xff]
    %v65 = vld [vmem:[%s1 + $0x50] sm:$0xff]
    %v66 = vld [vmem:[%s1 + $0x58] sm:$0xff]
    %v67 = vld [vmem:[%s1 + $0x60] sm:$0xff]
    %v68 = vld [vmem:[%s1 + $0x68] sm:$0xff]
    %v69 = vld [vmem:[%s1 + $0x70] sm:$0xff]
    %v70 = vld [vmem:[%s1 + $0x78] sm:$0xff]
    %v71 = vld [vmem:[%s1 + $0x80] sm:$0xff]
    %v72 = vld [vmem:[%s1 + $0x88] sm:$0xff]
    %v73 = vld [vmem:[%s1 + $0x90] sm:$0xff]
    %v74 = vld [vmem:[%s1 + $0x98] sm:$0xff]
    %v75 = vld [vmem:[%s1 + $0xa0] sm:$0xff]
    %v76 = vld [vmem:[%s1 + $0xa8] sm:$0xff]
    %v77 = vld [vmem:[%s1 + $0xb0] sm:$0xff]
    %v78 = vld [vmem:[%s1 + $0xb8] sm:$0xff]
    %v79 = vld [vmem:[%s1 + $0xc0] sm:$0xff]
    %v80 = vld [vmem:[%s1 + $0xc8] sm:$0xff]
    %v81 = vld [vmem:[%s1 + $0xd0] sm:$0xff]
    %v82 = vld [vmem:[%s1 + $0xd8] sm:$0xff]
    %v83 = vld [vmem:[%s1 + $0xe0] sm:$0xff]
    %v84 = vld [vmem:[%s1 + $0xe8] sm:$0xff]
    %v85 = vld [vmem:[%s1 + $0xf0] sm:$0xff]
    %v86 = vld [vmem:[%s1 + $0xf8] sm:$0xff]
    %v87 = vld [vmem:[%s1 + $0x100] sm:$0xff]
    %v88 = vld [vmem:[%s1 + $0x108] sm:$0xff]
    %v89 = vld [vmem:[%s1 + $0x110] sm:$0xff]
    %v90 = vld [vmem:[%s1 + $0x118] sm:$0xff]
    %v91 = vld [vmem:[%s1 + $0x120] sm:$0xff]
    %v92 = vld [vmem:[%s1 + $0x128] sm:$0xff]
    %v93 = vld [vmem:[%s1 + $0x130] sm:$0xff]
    %v94 = vld [vmem:[%s1 + $0x138] sm:$0xff]
    %v95 = vld [vmem:[%s1 + $0x140] sm:$0xff]
    %v96 = vld [vmem:[%s1 + $0x148] sm:$0xff]
    %v97 = vld [vmem:[%s1 + $0x150] sm:$0xff]
    %v98 = vld [vmem:[%s1 + $0x158] sm:$0xff]
    %v99 = vld [vmem:[%s1 + $0x160] sm:$0xff]
    %v100 = vld [vmem:[%s1 + $0x168] sm:$0xff]
    %v101 = vld [vmem:[%s1 + $0x170] sm:$0xff]
    %v102 = vld [vmem:[%s1 + $0x178] sm:$0xff]
    %v103 = vld [vmem:[%s1 + $0x180] sm:$0xff]
    %v104 = vld [vmem:[%s1 + $0x188] sm:$0xff]
    %v105 = vld [vmem:[%s1 + $0x190] sm:$0xff]
    %v106 = vld [vmem:[%s1 + $0x198] sm:$0xff]
    %v107 = vld [vmem:[%s1 + $0x1a0] sm:$0xff]
    %v108 = vld [vmem:[%s1 + $0x1a8] sm:$0xff]
    %v109 = vld [vmem:[%s1 + $0x1b0] sm:$0xff]
    %v110 = vld [vmem:[%s1 + $0x1b8] sm:$0xff]
    %v111 = vld [vmem:[%s1 + $0x1c0] sm:$0xff]
    %v112 = vld [vmem:[%s1 + $0x1c8] sm:$0xff]
    %v113 = vld [vmem:[%s1 + $0x1d0] sm:$0xff]
    %v114 = vld [vmem:[%s1 + $0x1d8] sm:$0xff]
    %v115 = vld [vmem:[%s1 + $0x1e0] sm:$0xff]
    %v116 = vld [vmem:[%s1 + $0x1e8] sm:$0xff]
    %v117 = vld [vmem:[%s1 + $0x1f0] sm:$0xff]
    %v118 = vld [vmem:[%s1 + $0x1f8] sm:$0xff]
    %v119 = vld [vmem:[%s1 + $0x200] sm:$0xff]
    %v120 = vld [vmem:[%s1 + $0x208] sm:$0xff]
    %v121 = vld [vmem:[%s1 + $0x210] sm:$0xff]
    %v122 = vld [vmem:[%s1 + $0x218] sm:$0xff]
    %v123 = vld [vmem:[%s1 + $0x220] sm:$0xff]
    %v124 = vld [vmem:[%s1 + $0x228] sm:$0xff]
    %v125 = vld [vmem:[%s1 + $0x230] sm:$0xff]
    %v126 = vld [vmem:[%s1 + $0x238] sm:$0xff]
    %v127 = vld [vmem:[%s1 + $0x240] sm:$0xff]
    %v128 = vld [vmem:[%s1 + $0x248] sm:$0xff]
    %v129 = vld [vmem:[%s1 + $0x250] sm:$0xff]
    %v130 = vld [vmem:[%s1 + $0x258] sm:$0xff]
    %v131 = vld [vmem:[%s1 + $0x260] sm:$0xff]
    %v132 = vld [vmem:[%s1 + $0x268] sm:$0xff]
    %v133 = vld [vmem:[%s1 + $0x270] sm:$0xff]
    %v134 = vld [vmem:[%s1 + $0x278] sm:$0xff]
    %v135 = vld [vmem:[%s1 + $0x280] sm:$0xff]
    %v136 = vld [vmem:[%s1 + $0x288] sm:$0xff]
    %v137 = vld [vmem:[%s1 + $0x290] sm:$0xff]
    %v138 = vld [vmem:[%s1 + $0x298] sm:$0xff]
    %v139 = vld [vmem:[%s1 + $0x2a0] sm:$0xff]
    %v140 = vld [vmem:[%s1 + $0x2a8] sm:$0xff]
    %v141 = vld [vmem:[%s1 + $0x2b0] sm:$0xff]
    %v142 = vld [vmem:[%s1 + $0x2b8] sm:$0xff]
    %v143 = vld [vmem:[%s1 + $0x2c0] sm:$0xff]
    %v144 = vld [vmem:[%s1 + $0x2c8] sm:$0xff]
    %v145 = vld [vmem:[%s1 + $0x2d0] sm:$0xff]
    %v146 = vld [vmem:[%s1 + $0x2d8] sm:$0xff]
    %v147 = vld [vmem:[%s1 + $0x2e0] sm:$0xff]
    %v148 = vld [vmem:[%s1 + $0x2e8] sm:$0xff]
    %v149 = vld [vmem:[%s1 + $0x2f0] sm:$0xff]
    %v150 = vld [vmem:[%s1 + $0x2f8] sm:$0xff]
    %v151 = vld [vmem:[%s1 + $0x300] sm:$0xff]
    %v152 = vld [vmem:[%s1 + $0x308] sm:$0xff]
    %v153 = vld [vmem:[%s1 + $0x310] sm:$0xff]
    %v154 = vld [vmem:[%s1 + $0x318] sm:$0xff]
    %v155 = vld [vmem:[%s1 + $0x320] sm:$0xff]
    %v156 = vld [vmem:[%s1 + $0x328] sm:$0xff]
    %v157 = vld [vmem:[%s1 + $0x330] sm:$0xff]
    %v158 = vld [vmem:[%s1 + $0x338] sm:$0xff]
    %v159 = vld [vmem:[%s1 + $0x340] sm:$0xff]
    %v160 = vld [vmem:[%s1 + $0x348] sm:$0xff]
    %v161 = vld [vmem:[%s1 + $0x350] sm:$0xff]
    %v162 = vld [vmem:[%s1 + $0x358] sm:$0xff]
    %v163 = vld [vmem:[%s1 + $0x360] sm:$0xff]
    %v164 = vld [vmem:[%s1 + $0x368] sm:$0xff]
    %v165 = vld [vmem:[%s1 + $0x370] sm:$0xff]
    %v166 = vld [vmem:[%s1 + $0x378] sm:$0xff]
    %v167 = vld [vmem:[%s1 + $0x380] sm:$0xff]
    %v168 = vld [vmem:[%s1 + $0x388] sm:$0xff]
    %v169 = vld [vmem:[%s1 + $0x390] sm:$0xff]
    %v170 = vld [vmem:[%s1 + $0x398] sm:$0xff]
    %v171 = vld [vmem:[%s1 + $0x3a0] sm:$0xff]
    %v172 = vld [vmem:[%s1 + $0x3a8] sm:$0xff]
    %v173 = vld [vmem:[%s1 + $0x3b0] sm:$0xff]
    %v174 = vld [vmem:[%s1 + $0x3b8] sm:$0xff]
    %v175 = vld [vmem:[%s1 + $0x3c0] sm:$0xff]
    %v176 = vld [vmem:[%s1 + $0x3c8] sm:$0xff]
    %v177 = vld [vmem:[%s1 + $0x3d0] sm:$0xff]
    %v178 = vld [vmem:[%s1 + $0x3d8] sm:$0xff]
    %v179 = vld [vmem:[%s1 + $0x3e0] sm:$0xff]
    %v180 = vld [vmem:[%s1 + $0x3e8] sm:$0xff]
    %v181 = vld [vmem:[%s1 + $0x3f0] sm:$0xff]
    %v182 = vld [vmem:[%s1 + $0x3f8] sm:$0xff]
    %v183 = vld [vmem:[%s1 + $0x400] sm:$0xff]
    %v184 = vld [vmem:[%s1 + $0x408] sm:$0xff]
    %v185 = vld [vmem:[%s1 + $0x410] sm:$0xff]
    %v186 = vld [vmem:[%s1 + $0x418] sm:$0xff]
    %v187 = vld [vmem:[%s1 + $0x420] sm:$0xff]
    %v188 = vld [vmem:[%s1 + $0x428] sm:$0xff]
    %v189 = vld [vmem:[%s1 + $0x430] sm:$0xff]
    %v190 = vld [vmem:[%s1 + $0x438] sm:$0xff]
    %v191 = vld [vmem:[%s1 + $0x440] sm:$0xff]
    %v192 = vld [vmem:[%s1 + $0x448] sm:$0xff]
    %v193 = vld [vmem:[%s1 + $0x450] sm:$0xff]
    %v194 = vld [vmem:[%s1 + $0x458] sm:$0xff]
    %v195 = vld [vmem:[%s1 + $0x460] sm:$0xff]
    %v196 = vld [vmem:[%s1 + $0x468] sm:$0xff]
    %v197 = vld [vmem:[%s1 + $0x470] sm:$0xff]
    %v198 = vld [vmem:[%s1 + $0x478] sm:$0xff]
    %v199 = vld [vmem:[%s1 + $0x480] sm:$0xff]
    %v200 = vld [vmem:[%s1 + $0x488] sm:$0xff]
    %v201 = vld [vmem:[%s1 + $0x490] sm:$0xff]
    %v202 = vld [vmem:[%s1 + $0x498] sm:$0xff]
    %v203 = vld [vmem:[%s1 + $0x4a0] sm:$0xff]
    %v204 = vld [vmem:[%s1 + $0x4a8] sm:$0xff]
    %v205 = vld [vmem:[%s1 + $0x4b0] sm:$0xff]
    %v206 = vld [vmem:[%s1 + $0x4b8] sm:$0xff]
    %v207 = vld [vmem:[%s1 + $0x4c0] sm:$0xff]
    %v208 = vld [vmem:[%s1 + $0x4c8] sm:$0xff]
    %v209 = vld [vmem:[%s1 + $0x4d0] sm:$0xff]
    %v210 = vld [vmem:[%s1 + $0x4d8] sm:$0xff]
    %v211 = vld [vmem:[%s1 + $0x4e0] sm:$0xff]
    %v212 = vld [vmem:[%s1 + $0x4e8] sm:$0xff]
    %v213 = vld [vmem:[%s1 + $0x4f0] sm:$0xff]
    %v214 = vld [vmem:[%s1 + $0x4f8] sm:$0xff]
    %v215 = vld [vmem:[%s1 + $0x500] sm:$0xff]
    %v216 = vld [vmem:[%s1 + $0x508] sm:$0xff]
    %v217 = vld [vmem:[%s1 + $0x510] sm:$0xff]
    %v218 = vld [vmem:[%s1 + $0x518] sm:$0xff]
    %v219 = vld [vmem:[%s1 + $0x520] sm:$0xff]
    %v220 = vld [vmem:[%s1 + $0x528] sm:$0xff]
    %v221 = vld [vmem:[%s1 + $0x530] sm:$0xff]
    %v222 = vld [vmem:[%s1 + $0x538] sm:$0xff]
    %v223 = vld [vmem:[%s1 + $0x540] sm:$0xff]
    %v224 = vld [vmem:[%s1 + $0x548] sm:$0xff]
    %v225 = vld [vmem:[%s1 + $0x550] sm:$0xff]
    %v226 = vld [vmem:[%s1 + $0x558] sm:$0xff]
    %v227 = vld [vmem:[%s1 + $0x560] sm:$0xff]
    %v228 = vld [vmem:[%s1 + $0x568] sm:$0xff]
    %v229 = vld [vmem:[%s1 + $0x570] sm:$0xff]
    %v230 = vld [vmem:[%s1 + $0x578] sm:$0xff]
    %v231 = vld [vmem:[%s1 + $0x580] sm:$0xff]
    %v232 = vld [vmem:[%s1 + $0x588] sm:$0xff]
    %v233 = vld [vmem:[%s1 + $0x590] sm:$0xff]
    %v234 = vld [vmem:[%s1 + $0x598] sm:$0xff]
    %v235 = vld [vmem:[%s1 + $0x5a0] sm:$0xff]
    %v236 = vld [vmem:[%s1 + $0x5a8] sm:$0xff]
    %v237 = vld [vmem:[%s1 + $0x5b0] sm:$0xff]
    %v238 = vld [vmem:[%s1 + $0x5b8] sm:$0xff]
    %v239 = vld [vmem:[%s1 + $0x5c0] sm:$0xff]
    %v240 = vld [vmem:[%s1 + $0x5c8] sm:$0xff]
    %v241 = vld [vmem:[%s1 + $0x5d0] sm:$0xff]
    %v242 = vld [vmem:[%s1 + $0x5d8] sm:$0xff]
    %v243 = vld [vmem:[%s1 + $0x5e0] sm:$0xff]
    %v244 = vld [vmem:[%s1 + $0x5e8] sm:$0xff]
    %v245 = vld [vmem:[%s1 + $0x5f0] sm:$0xff]
    %v246 = vld [vmem:[%s1 + $0x5f8] sm:$0xff]
    %v247 = vld [vmem:[%s1 + $0x600] sm:$0xff]
    %v248 = vld [vmem:[%s1 + $0x608] sm:$0xff]
    %v249 = vld [vmem:[%s1 + $0x610] sm:$0xff]
    %v250 = vld [vmem:[%s1 + $0x618] sm:$0xff]
    %v251 = vld [vmem:[%s2] sm:$0xf]
    %v253 = vlaneseq
    %v254 = vshrl.u32 %v253, 7
    %v255 = vsub.s32 0, %v254
    %v256 = vrot.slane %v251, %v255
    %v257 = vlaneseq
    %v258 = vshrl.u32 %v257, 7
    %v259 = vsub.s32 1, %v258
    %v260 = vrot.slane %v251, %v259
    %v261 = vlaneseq
    %v262 = vshrl.u32 %v261, 7
    %v263 = vsub.s32 2, %v262
    %v264 = vrot.slane %v251, %v263
    %v265 = vlaneseq
    %v266 = vshrl.u32 %v265, 7
    %v267 = vsub.s32 3, %v266
    %v268 = vrot.slane %v251, %v267
    %v469 = vunpack.c.l.b16 %v55
    %v470 = vunpack.c.h.b16 %v55
    %v471 = vunpack.c.l.b16 %v56
    %v472 = vunpack.c.h.b16 %v56
    %v473 = vunpack.c.l.b16 %v57
    %v474 = vunpack.c.h.b16 %v57
    %v475 = vunpack.c.l.b16 %v58
    %v476 = vunpack.c.h.b16 %v58
    %v477 = vunpack.c.l.b16 %v59
    %v478 = vunpack.c.h.b16 %v59
    %v479 = vunpack.c.l.b16 %v60
    %v480 = vunpack.c.h.b16 %v60
    %v481 = vunpack.c.l.b16 %v61
    %v482 = vunpack.c.h.b16 %v61
    %v483 = vunpack.c.l.b16 %v62
    %v484 = vunpack.c.h.b16 %v62
    %v485 = vunpack.c.l.b16 %v63
    %v486 = vunpack.c.h.b16 %v63
    %v487 = vunpack.c.l.b16 %v64
    %v488 = vunpack.c.h.b16 %v64
    %v489 = vunpack.c.l.b16 %v65
    %v490 = vunpack.c.h.b16 %v65
    %v491 = vunpack.c.l.b16 %v66
    %v492 = vunpack.c.h.b16 %v66
    %v493 = vunpack.c.l.b16 %v67
    %v494 = vunpack.c.h.b16 %v67
    %v495 = vunpack.c.l.b16 %v68
    %v496 = vunpack.c.h.b16 %v68
    %v497 = vunpack.c.l.b16 %v69
    %v498 = vunpack.c.h.b16 %v69
    %v499 = vunpack.c.l.b16 %v70
    %v500 = vunpack.c.h.b16 %v70
    %v501 = vunpack.c.l.b16 %v71
    %v502 = vunpack.c.h.b16 %v71
    %v503 = vunpack.c.l.b16 %v72
    %v504 = vunpack.c.h.b16 %v72
    %v505 = vunpack.c.l.b16 %v73
    %v506 = vunpack.c.h.b16 %v73
    %v507 = vunpack.c.l.b16 %v74
    %v508 = vunpack.c.h.b16 %v74
    %v509 = vunpack.c.l.b16 %v75
    %v510 = vunpack.c.h.b16 %v75
    %v511 = vunpack.c.l.b16 %v76
    %v512 = vunpack.c.h.b16 %v76
    %v513 = vunpack.c.l.b16 %v77
    %v514 = vunpack.c.h.b16 %v77
    %v515 = vunpack.c.l.b16 %v78
    %v516 = vunpack.c.h.b16 %v78
    %v517 = vunpack.c.l.b16 %v79
    %v518 = vunpack.c.h.b16 %v79
    %v519 = vunpack.c.l.b16 %v80
    %v520 = vunpack.c.h.b16 %v80
    %v521 = vunpack.c.l.b16 %v81
    %v522 = vunpack.c.h.b16 %v81
    %v523 = vunpack.c.l.b16 %v82
    %v524 = vunpack.c.h.b16 %v82
    %v525 = vunpack.c.l.b16 %v83
    %v526 = vunpack.c.h.b16 %v83
    %v527 = vunpack.c.l.b16 %v84
    %v528 = vunpack.c.h.b16 %v84
    %v529 = vunpack.c.l.b16 %v85
    %v530 = vunpack.c.h.b16 %v85
    %v531 = vunpack.c.l.b16 %v86
    %v532 = vunpack.c.h.b16 %v86
    %v533 = vunpack.c.l.b16 %v87
    %v534 = vunpack.c.h.b16 %v87
    %v535 = vunpack.c.l.b16 %v88
    %v536 = vunpack.c.h.b16 %v88
    %v537 = vunpack.c.l.b16 %v89
    %v538 = vunpack.c.h.b16 %v89
    %v539 = vunpack.c.l.b16 %v90
    %v540 = vunpack.c.h.b16 %v90
    %v541 = vunpack.c.l.b16 %v91
    %v542 = vunpack.c.h.b16 %v91
    %v543 = vunpack.c.l.b16 %v92
    %v544 = vunpack.c.h.b16 %v92
    %v545 = vunpack.c.l.b16 %v93
    %v546 = vunpack.c.h.b16 %v93
    %v547 = vunpack.c.l.b16 %v94
    %v548 = vunpack.c.h.b16 %v94
    %v549 = vunpack.c.l.b16 %v95
    %v550 = vunpack.c.h.b16 %v95
    %v551 = vunpack.c.l.b16 %v96
    %v552 = vunpack.c.h.b16 %v96
    %v553 = vunpack.c.l.b16 %v97
    %v554 = vunpack.c.h.b16 %v97
    %v555 = vunpack.c.l.b16 %v98
    %v556 = vunpack.c.h.b16 %v98
    %v557 = vunpack.c.l.b16 %v99
    %v558 = vunpack.c.h.b16 %v99
    %v559 = vunpack.c.l.b16 %v100
    %v560 = vunpack.c.h.b16 %v100
    %v561 = vunpack.c.l.b16 %v101
    %v562 = vunpack.c.h.b16 %v101
    %v563 = vunpack.c.l.b16 %v102
    %v564 = vunpack.c.h.b16 %v102
    %v565 = vunpack.c.l.b16 %v103
    %v566 = vunpack.c.h.b16 %v103
    %v567 = vunpack.c.l.b16 %v104
    %v568 = vunpack.c.h.b16 %v104
    %v569 = vunpack.c.l.b16 %v105
    %v570 = vunpack.c.h.b16 %v105
    %v571 = vunpack.c.l.b16 %v106
    %v572 = vunpack.c.h.b16 %v106
    %v573 = vunpack.c.l.b16 %v107
    %v574 = vunpack.c.h.b16 %v107
    %v575 = vunpack.c.l.b16 %v108
    %v576 = vunpack.c.h.b16 %v108
    %v577 = vunpack.c.l.b16 %v109
    %v578 = vunpack.c.h.b16 %v109
    %v579 = vunpack.c.l.b16 %v110
    %v580 = vunpack.c.h.b16 %v110
    %v581 = vunpack.c.l.b16 %v111
    %v582 = vunpack.c.h.b16 %v111
    %v583 = vunpack.c.l.b16 %v112
    %v584 = vunpack.c.h.b16 %v112
    %v585 = vunpack.c.l.b16 %v113
    %v586 = vunpack.c.h.b16 %v113
    %v587 = vunpack.c.l.b16 %v114
    %v588 = vunpack.c.h.b16 %v114
    %v589 = vunpack.c.l.b16 %v115
    %v590 = vunpack.c.h.b16 %v115
    %v591 = vunpack.c.l.b16 %v116
    %v592 = vunpack.c.h.b16 %v116
    %v593 = vunpack.c.l.b16 %v117
    %v594 = vunpack.c.h.b16 %v117
    %v595 = vunpack.c.l.b16 %v118
    %v596 = vunpack.c.h.b16 %v118
    %v597 = vunpack.c.l.b16 %v119
    %v598 = vunpack.c.h.b16 %v119
    %v599 = vunpack.c.l.b16 %v120
    %v600 = vunpack.c.h.b16 %v120
    %v601 = vunpack.c.l.b16 %v121
    %v602 = vunpack.c.h.b16 %v121
    %v603 = vunpack.c.l.b16 %v122
    %v604 = vunpack.c.h.b16 %v122
    %v605 = vunpack.c.l.b16 %v123
    %v606 = vunpack.c.h.b16 %v123
    %v607 = vunpack.c.l.b16 %v124
    %v608 = vunpack.c.h.b16 %v124
    %v609 = vunpack.c.l.b16 %v125
    %v610 = vunpack.c.h.b16 %v125
    %v611 = vunpack.c.l.b16 %v126
    %v612 = vunpack.c.h.b16 %v126
    %v613 = vunpack.c.l.b16 %v127
    %v614 = vunpack.c.h.b16 %v127
    %v615 = vunpack.c.l.b16 %v128
    %v616 = vunpack.c.h.b16 %v128
    %v617 = vunpack.c.l.b16 %v129
    %v618 = vunpack.c.h.b16 %v129
    %v619 = vunpack.c.l.b16 %v130
    %v620 = vunpack.c.h.b16 %v130
    %v621 = vunpack.c.l.b16 %v131
    %v622 = vunpack.c.h.b16 %v131
    %v623 = vunpack.c.l.b16 %v132
    %v624 = vunpack.c.h.b16 %v132
    %v625 = vunpack.c.l.b16 %v133
    %v626 = vunpack.c.h.b16 %v133
    %v627 = vunpack.c.l.b16 %v134
    %v628 = vunpack.c.h.b16 %v134
    %v629 = vunpack.c.l.b16 %v135
    %v630 = vunpack.c.h.b16 %v135
    %v631 = vunpack.c.l.b16 %v136
    %v632 = vunpack.c.h.b16 %v136
    %v633 = vunpack.c.l.b16 %v137
    %v634 = vunpack.c.h.b16 %v137
    %v635 = vunpack.c.l.b16 %v138
    %v636 = vunpack.c.h.b16 %v138
    %v637 = vunpack.c.l.b16 %v139
    %v638 = vunpack.c.h.b16 %v139
    %v639 = vunpack.c.l.b16 %v140
    %v640 = vunpack.c.h.b16 %v140
    %v641 = vunpack.c.l.b16 %v141
    %v642 = vunpack.c.h.b16 %v141
    %v643 = vunpack.c.l.b16 %v142
    %v644 = vunpack.c.h.b16 %v142
    %v645 = vunpack.c.l.b16 %v143
    %v646 = vunpack.c.h.b16 %v143
    %v647 = vunpack.c.l.b16 %v144
    %v648 = vunpack.c.h.b16 %v144
    %v649 = vunpack.c.l.b16 %v145
    %v650 = vunpack.c.h.b16 %v145
    %v651 = vunpack.c.l.b16 %v146
    %v652 = vunpack.c.h.b16 %v146
    %v653 = vunpack.c.l.b16 %v147
    %v654 = vunpack.c.h.b16 %v147
    %v655 = vunpack.c.l.b16 %v148
    %v656 = vunpack.c.h.b16 %v148
    %v657 = vunpack.c.l.b16 %v149
    %v658 = vunpack.c.h.b16 %v149
    %v659 = vunpack.c.l.b16 %v150
    %v660 = vunpack.c.h.b16 %v150
    %v661 = vunpack.c.l.b16 %v151
    %v662 = vunpack.c.h.b16 %v151
    %v663 = vunpack.c.l.b16 %v152
    %v664 = vunpack.c.h.b16 %v152
    %v665 = vunpack.c.l.b16 %v153
    %v666 = vunpack.c.h.b16 %v153
    %v667 = vunpack.c.l.b16 %v154
    %v668 = vunpack.c.h.b16 %v154
    %v669 = vunpack.c.l.b16 %v155
    %v670 = vunpack.c.h.b16 %v155
    %v671 = vunpack.c.l.b16 %v156
    %v672 = vunpack.c.h.b16 %v156
    %v673 = vunpack.c.l.b16 %v157
    %v674 = vunpack.c.h.b16 %v157
    %v675 = vunpack.c.l.b16 %v158
    %v676 = vunpack.c.h.b16 %v158
    %v677 = vunpack.c.l.b16 %v159
    %v678 = vunpack.c.h.b16 %v159
    %v679 = vunpack.c.l.b16 %v160
    %v680 = vunpack.c.h.b16 %v160
    %v681 = vunpack.c.l.b16 %v161
    %v682 = vunpack.c.h.b16 %v161
    %v683 = vunpack.c.l.b16 %v162
    %v684 = vunpack.c.h.b16 %v162
    %v685 = vunpack.c.l.b16 %v163
    %v686 = vunpack.c.h.b16 %v163
    %v687 = vunpack.c.l.b16 %v164
    %v688 = vunpack.c.h.b16 %v164
    %v689 = vunpack.c.l.b16 %v165
    %v690 = vunpack.c.h.b16 %v165
    %v691 = vunpack.c.l.b16 %v166
    %v692 = vunpack.c.h.b16 %v166
    %v693 = vunpack.c.l.b16 %v167
    %v694 = vunpack.c.h.b16 %v167
    %v695 = vunpack.c.l.b16 %v168
    %v696 = vunpack.c.h.b16 %v168
    %v697 = vunpack.c.l.b16 %v169
    %v698 = vunpack.c.h.b16 %v169
    %v699 = vunpack.c.l.b16 %v170
    %v700 = vunpack.c.h.b16 %v170
    %v701 = vunpack.c.l.b16 %v171
    %v702 = vunpack.c.h.b16 %v171
    %v703 = vunpack.c.l.b16 %v172
    %v704 = vunpack.c.h.b16 %v172
    %v705 = vunpack.c.l.b16 %v173
    %v706 = vunpack.c.h.b16 %v173
    %v707 = vunpack.c.l.b16 %v174
    %v708 = vunpack.c.h.b16 %v174
    %v709 = vunpack.c.l.b16 %v175
    %v710 = vunpack.c.h.b16 %v175
    %v711 = vunpack.c.l.b16 %v176
    %v712 = vunpack.c.h.b16 %v176
    %v713 = vunpack.c.l.b16 %v177
    %v714 = vunpack.c.h.b16 %v177
    %v715 = vunpack.c.l.b16 %v178
    %v716 = vunpack.c.h.b16 %v178
    %v717 = vunpack.c.l.b16 %v179
    %v718 = vunpack.c.h.b16 %v179
    %v719 = vunpack.c.l.b16 %v180
    %v720 = vunpack.c.h.b16 %v180
    %v721 = vunpack.c.l.b16 %v181
    %v722 = vunpack.c.h.b16 %v181
    %v723 = vunpack.c.l.b16 %v182
    %v724 = vunpack.c.h.b16 %v182
    %v725 = vunpack.c.l.b16 %v183
    %v726 = vunpack.c.h.b16 %v183
    %v727 = vunpack.c.l.b16 %v184
    %v728 = vunpack.c.h.b16 %v184
    %v729 = vunpack.c.l.b16 %v185
    %v730 = vunpack.c.h.b16 %v185
    %v731 = vunpack.c.l.b16 %v186
    %v732 = vunpack.c.h.b16 %v186
    %v733 = vunpack.c.l.b16 %v187
    %v734 = vunpack.c.h.b16 %v187
    %v735 = vunpack.c.l.b16 %v188
    %v736 = vunpack.c.h.b16 %v188
    %v737 = vunpack.c.l.b16 %v189
    %v738 = vunpack.c.h.b16 %v189
    %v739 = vunpack.c.l.b16 %v190
    %v740 = vunpack.c.h.b16 %v190
    %v741 = vunpack.c.l.b16 %v191
    %v742 = vunpack.c.h.b16 %v191
    %v743 = vunpack.c.l.b16 %v192
    %v744 = vunpack.c.h.b16 %v192
    %v745 = vunpack.c.l.b16 %v193
    %v746 = vunpack.c.h.b16 %v193
    %v747 = vunpack.c.l.b16 %v194
    %v748 = vunpack.c.h.b16 %v194
    %v749 = vunpack.c.l.b16 %v195
    %v750 = vunpack.c.h.b16 %v195
    %v751 = vunpack.c.l.b16 %v196
    %v752 = vunpack.c.h.b16 %v196
    %v753 = vunpack.c.l.b16 %v197
    %v754 = vunpack.c.h.b16 %v197
    %v755 = vunpack.c.l.b16 %v198
    %v756 = vunpack.c.h.b16 %v198
    %v757 = vunpack.c.l.b16 %v199
    %v758 = vunpack.c.h.b16 %v199
    %v759 = vunpack.c.l.b16 %v200
    %v760 = vunpack.c.h.b16 %v200
    %v761 = vunpack.c.l.b16 %v201
    %v762 = vunpack.c.h.b16 %v201
    %v763 = vunpack.c.l.b16 %v202
    %v764 = vunpack.c.h.b16 %v202
    %v765 = vunpack.c.l.b16 %v203
    %v766 = vunpack.c.h.b16 %v203
    %v767 = vunpack.c.l.b16 %v204
    %v768 = vunpack.c.h.b16 %v204
    %v769 = vunpack.c.l.b16 %v205
    %v770 = vunpack.c.h.b16 %v205
    %v771 = vunpack.c.l.b16 %v206
    %v772 = vunpack.c.h.b16 %v206
    %v773 = vunpack.c.l.b16 %v207
    %v774 = vunpack.c.h.b16 %v207
    %v775 = vunpack.c.l.b16 %v208
    %v776 = vunpack.c.h.b16 %v208
    %v777 = vunpack.c.l.b16 %v209
    %v778 = vunpack.c.h.b16 %v209
    %v779 = vunpack.c.l.b16 %v210
    %v780 = vunpack.c.h.b16 %v210
    %v781 = vunpack.c.l.b16 %v211
    %v782 = vunpack.c.h.b16 %v211
    %v783 = vunpack.c.l.b16 %v212
    %v784 = vunpack.c.h.b16 %v212
    %v785 = vunpack.c.l.b16 %v213
    %v786 = vunpack.c.h.b16 %v213
    %v787 = vunpack.c.l.b16 %v214
    %v788 = vunpack.c.h.b16 %v214
    %v789 = vunpack.c.l.b16 %v215
    %v790 = vunpack.c.h.b16 %v215
    %v791 = vunpack.c.l.b16 %v216
    %v792 = vunpack.c.h.b16 %v216
    %v793 = vunpack.c.l.b16 %v217
    %v794 = vunpack.c.h.b16 %v217
    %v795 = vunpack.c.l.b16 %v218
    %v796 = vunpack.c.h.b16 %v218
    %v797 = vunpack.c.l.b16 %v219
    %v798 = vunpack.c.h.b16 %v219
    %v799 = vunpack.c.l.b16 %v220
    %v800 = vunpack.c.h.b16 %v220
    %v801 = vunpack.c.l.b16 %v221
    %v802 = vunpack.c.h.b16 %v221
    %v803 = vunpack.c.l.b16 %v222
    %v804 = vunpack.c.h.b16 %v222
    %v805 = vunpack.c.l.b16 %v223
    %v806 = vunpack.c.h.b16 %v223
    %v807 = vunpack.c.l.b16 %v224
    %v808 = vunpack.c.h.b16 %v224
    %v809 = vunpack.c.l.b16 %v225
    %v810 = vunpack.c.h.b16 %v225
    %v811 = vunpack.c.l.b16 %v226
    %v812 = vunpack.c.h.b16 %v226
    %v813 = vunpack.c.l.b16 %v227
    %v814 = vunpack.c.h.b16 %v227
    %v815 = vunpack.c.l.b16 %v228
    %v816 = vunpack.c.h.b16 %v228
    %v817 = vunpack.c.l.b16 %v229
    %v818 = vunpack.c.h.b16 %v229
    %v819 = vunpack.c.l.b16 %v230
    %v820 = vunpack.c.h.b16 %v230
    %v821 = vunpack.c.l.b16 %v231
    %v822 = vunpack.c.h.b16 %v231
    %v823 = vunpack.c.l.b16 %v232
    %v824 = vunpack.c.h.b16 %v232
    %v825 = vunpack.c.l.b16 %v233
    %v826 = vunpack.c.h.b16 %v233
    %v827 = vunpack.c.l.b16 %v234
    %v828 = vunpack.c.h.b16 %v234
    %v829 = vunpack.c.l.b16 %v235
    %v830 = vunpack.c.h.b16 %v235
    %v831 = vunpack.c.l.b16 %v236
    %v832 = vunpack.c.h.b16 %v236
    %v833 = vunpack.c.l.b16 %v237
    %v834 = vunpack.c.h.b16 %v237
    %v835 = vunpack.c.l.b16 %v238
    %v836 = vunpack.c.h.b16 %v238
    %v837 = vunpack.c.l.b16 %v239
    %v838 = vunpack.c.h.b16 %v239
    %v839 = vunpack.c.l.b16 %v240
    %v840 = vunpack.c.h.b16 %v240
    %v841 = vunpack.c.l.b16 %v241
    %v842 = vunpack.c.h.b16 %v241
    %v843 = vunpack.c.l.b16 %v242
    %v844 = vunpack.c.h.b16 %v242
    %v845 = vunpack.c.l.b16 %v243
    %v846 = vunpack.c.h.b16 %v243
    %v847 = vunpack.c.l.b16 %v244
    %v848 = vunpack.c.h.b16 %v244
    %v849 = vunpack.c.l.b16 %v245
    %v850 = vunpack.c.h.b16 %v245
    %v851 = vunpack.c.l.b16 %v246
    %v852 = vunpack.c.h.b16 %v246
    %v853 = vunpack.c.l.b16 %v247
    %v854 = vunpack.c.h.b16 %v247
    %v855 = vunpack.c.l.b16 %v248
    %v856 = vunpack.c.h.b16 %v248
    %v857 = vunpack.c.l.b16 %v249
    %v858 = vunpack.c.h.b16 %v249
    %v859 = vunpack.c.l.b16 %v250
    %v860 = vunpack.c.h.b16 %v250
    %v861 = vpack.c.b16 %v473, %v469
    %v862 = vpack.c.b16 %v474, %v470
    %v863 = vpack.c.b16 %v475, %v471
    %v864 = vpack.c.b16 %v476, %v472
    %v865 = vpack.c.b16 %v481, %v477
    %v866 = vpack.c.b16 %v482, %v478
    %v867 = vpack.c.b16 %v483, %v479
    %v868 = vpack.c.b16 %v484, %v480
    %v869 = vpack.c.b16 %v489, %v485
    %v870 = vpack.c.b16 %v490, %v486
    %v871 = vpack.c.b16 %v491, %v487
    %v872 = vpack.c.b16 %v492, %v488
    %v873 = vpack.c.b16 %v497, %v493
    %v874 = vpack.c.b16 %v498, %v494
    %v875 = vpack.c.b16 %v499, %v495
    %v876 = vpack.c.b16 %v500, %v496
    %v877 = vpack.c.b16 %v505, %v501
    %v878 = vpack.c.b16 %v506, %v502
    %v879 = vpack.c.b16 %v507, %v503
    %v880 = vpack.c.b16 %v508, %v504
    %v881 = vpack.c.b16 %v513, %v509
    %v882 = vpack.c.b16 %v514, %v510
    %v883 = vpack.c.b16 %v515, %v511
    %v884 = vpack.c.b16 %v516, %v512
    %v885 = vpack.c.b16 %v521, %v517
    %v886 = vpack.c.b16 %v522, %v518
    %v887 = vpack.c.b16 %v523, %v519
    %v888 = vpack.c.b16 %v524, %v520
    %v889 = vpack.c.b16 %v529, %v525
    %v890 = vpack.c.b16 %v530, %v526
    %v891 = vpack.c.b16 %v531, %v527
    %v892 = vpack.c.b16 %v532, %v528
    %v893 = vpack.c.b16 %v537, %v533
    %v894 = vpack.c.b16 %v538, %v534
    %v895 = vpack.c.b16 %v539, %v535
    %v896 = vpack.c.b16 %v540, %v536
    %v897 = vpack.c.b16 %v545, %v541
    %v898 = vpack.c.b16 %v546, %v542
    %v899 = vpack.c.b16 %v547, %v543
    %v900 = vpack.c.b16 %v548, %v544
    %v901 = vpack.c.b16 %v553, %v549
    %v902 = vpack.c.b16 %v554, %v550
    %v903 = vpack.c.b16 %v555, %v551
    %v904 = vpack.c.b16 %v556, %v552
    %v905 = vpack.c.b16 %v561, %v557
    %v906 = vpack.c.b16 %v562, %v558
    %v907 = vpack.c.b16 %v563, %v559
    %v908 = vpack.c.b16 %v564, %v560
    %v909 = vpack.c.b16 %v569, %v565
    %v910 = vpack.c.b16 %v570, %v566
    %v911 = vpack.c.b16 %v571, %v567
    %v912 = vpack.c.b16 %v572, %v568
    %v913 = vpack.c.b16 %v577, %v573
    %v914 = vpack.c.b16 %v578, %v574
    %v915 = vpack.c.b16 %v579, %v575
    %v916 = vpack.c.b16 %v580, %v576
    %v917 = vpack.c.b16 %v585, %v581
    %v918 = vpack.c.b16 %v586, %v582
    %v919 = vpack.c.b16 %v587, %v583
    %v920 = vpack.c.b16 %v588, %v584
    %v921 = vpack.c.b16 %v593, %v589
    %v922 = vpack.c.b16 %v594, %v590
    %v923 = vpack.c.b16 %v595, %v591
    %v924 = vpack.c.b16 %v596, %v592
    %v925 = vpack.c.b16 %v601, %v597
    %v926 = vpack.c.b16 %v602, %v598
    %v927 = vpack.c.b16 %v603, %v599
    %v928 = vpack.c.b16 %v604, %v600
    %v929 = vpack.c.b16 %v609, %v605
    %v930 = vpack.c.b16 %v610, %v606
    %v931 = vpack.c.b16 %v611, %v607
    %v932 = vpack.c.b16 %v612, %v608
    %v933 = vpack.c.b16 %v617, %v613
    %v934 = vpack.c.b16 %v618, %v614
    %v935 = vpack.c.b16 %v619, %v615
    %v936 = vpack.c.b16 %v620, %v616
    %v937 = vpack.c.b16 %v625, %v621
    %v938 = vpack.c.b16 %v626, %v622
    %v939 = vpack.c.b16 %v627, %v623
    %v940 = vpack.c.b16 %v628, %v624
    %v941 = vpack.c.b16 %v633, %v629
    %v942 = vpack.c.b16 %v634, %v630
    %v943 = vpack.c.b16 %v635, %v631
    %v944 = vpack.c.b16 %v636, %v632
    %v945 = vpack.c.b16 %v641, %v637
    %v946 = vpack.c.b16 %v642, %v638
    %v947 = vpack.c.b16 %v643, %v639
    %v948 = vpack.c.b16 %v644, %v640
    %v949 = vpack.c.b16 %v649, %v645
    %v950 = vpack.c.b16 %v650, %v646
    %v951 = vpack.c.b16 %v651, %v647
    %v952 = vpack.c.b16 %v652, %v648
    %v953 = vpack.c.b16 %v657, %v653
    %v954 = vpack.c.b16 %v658, %v654
    %v955 = vpack.c.b16 %v659, %v655
    %v956 = vpack.c.b16 %v660, %v656
    %v957 = vpack.c.b16 %v665, %v661
    %v958 = vpack.c.b16 %v666, %v662
    %v959 = vpack.c.b16 %v667, %v663
    %v960 = vpack.c.b16 %v668, %v664
    %v961 = vpack.c.b16 %v673, %v669
    %v962 = vpack.c.b16 %v674, %v670
    %v963 = vpack.c.b16 %v675, %v671
    %v964 = vpack.c.b16 %v676, %v672
    %v965 = vpack.c.b16 %v681, %v677
    %v966 = vpack.c.b16 %v682, %v678
    %v967 = vpack.c.b16 %v683, %v679
    %v968 = vpack.c.b16 %v684, %v680
    %v969 = vpack.c.b16 %v689, %v685
    %v970 = vpack.c.b16 %v690, %v686
    %v971 = vpack.c.b16 %v691, %v687
    %v972 = vpack.c.b16 %v692, %v688
    %v973 = vpack.c.b16 %v697, %v693
    %v974 = vpack.c.b16 %v698, %v694
    %v975 = vpack.c.b16 %v699, %v695
    %v976 = vpack.c.b16 %v700, %v696
    %v977 = vpack.c.b16 %v705, %v701
    %v978 = vpack.c.b16 %v706, %v702
    %v979 = vpack.c.b16 %v707, %v703
    %v980 = vpack.c.b16 %v708, %v704
    %v981 = vpack.c.b16 %v713, %v709
    %v982 = vpack.c.b16 %v714, %v710
    %v983 = vpack.c.b16 %v715, %v711
    %v984 = vpack.c.b16 %v716, %v712
    %v985 = vpack.c.b16 %v721, %v717
    %v986 = vpack.c.b16 %v722, %v718
    %v987 = vpack.c.b16 %v723, %v719
    %v988 = vpack.c.b16 %v724, %v720
    %v989 = vpack.c.b16 %v729, %v725
    %v990 = vpack.c.b16 %v730, %v726
    %v991 = vpack.c.b16 %v731, %v727
    %v992 = vpack.c.b16 %v732, %v728
    %v993 = vpack.c.b16 %v737, %v733
    %v994 = vpack.c.b16 %v738, %v734
    %v995 = vpack.c.b16 %v739, %v735
    %v996 = vpack.c.b16 %v740, %v736
    %v997 = vpack.c.b16 %v745, %v741
    %v998 = vpack.c.b16 %v746, %v742
    %v999 = vpack.c.b16 %v747, %v743
    %v1000 = vpack.c.b16 %v748, %v744
    %v1001 = vpack.c.b16 %v753, %v749
    %v1002 = vpack.c.b16 %v754, %v750
    %v1003 = vpack.c.b16 %v755, %v751
    %v1004 = vpack.c.b16 %v756, %v752
    %v1005 = vpack.c.b16 %v761, %v757
    %v1006 = vpack.c.b16 %v762, %v758
    %v1007 = vpack.c.b16 %v763, %v759
    %v1008 = vpack.c.b16 %v764, %v760
    %v1009 = vpack.c.b16 %v769, %v765
    %v1010 = vpack.c.b16 %v770, %v766
    %v1011 = vpack.c.b16 %v771, %v767
    %v1012 = vpack.c.b16 %v772, %v768
    %v1013 = vpack.c.b16 %v777, %v773
    %v1014 = vpack.c.b16 %v778, %v774
    %v1015 = vpack.c.b16 %v779, %v775
    %v1016 = vpack.c.b16 %v780, %v776
    %v1017 = vpack.c.b16 %v785, %v781
    %v1018 = vpack.c.b16 %v786, %v782
    %v1019 = vpack.c.b16 %v787, %v783
    %v1020 = vpack.c.b16 %v788, %v784
    %v1021 = vpack.c.b16 %v793, %v789
    %v1022 = vpack.c.b16 %v794, %v790
    %v1023 = vpack.c.b16 %v795, %v791
    %v1024 = vpack.c.b16 %v796, %v792
    %v1025 = vpack.c.b16 %v801, %v797
    %v1026 = vpack.c.b16 %v802, %v798
    %v1027 = vpack.c.b16 %v803, %v799
    %v1028 = vpack.c.b16 %v804, %v800
    %v1029 = vpack.c.b16 %v809, %v805
    %v1030 = vpack.c.b16 %v810, %v806
    %v1031 = vpack.c.b16 %v811, %v807
    %v1032 = vpack.c.b16 %v812, %v808
    %v1033 = vpack.c.b16 %v817, %v813
    %v1034 = vpack.c.b16 %v818, %v814
    %v1035 = vpack.c.b16 %v819, %v815
    %v1036 = vpack.c.b16 %v820, %v816
    %v1037 = vpack.c.b16 %v825, %v821
    %v1038 = vpack.c.b16 %v826, %v822
    %v1039 = vpack.c.b16 %v827, %v823
    %v1040 = vpack.c.b16 %v828, %v824
    %v1041 = vpack.c.b16 %v833, %v829
    %v1042 = vpack.c.b16 %v834, %v830
    %v1043 = vpack.c.b16 %v835, %v831
    %v1044 = vpack.c.b16 %v836, %v832
    %v1045 = vpack.c.b16 %v841, %v837
    %v1046 = vpack.c.b16 %v842, %v838
    %v1047 = vpack.c.b16 %v843, %v839
    %v1048 = vpack.c.b16 %v844, %v840
    %v1049 = vpack.c.b16 %v849, %v845
    %v1050 = vpack.c.b16 %v850, %v846
    %v1051 = vpack.c.b16 %v851, %v847
    %v1052 = vpack.c.b16 %v852, %v848
    %v1053 = vpack.c.b16 %v857, %v853
    %v1054 = vpack.c.b16 %v858, %v854
    %v1055 = vpack.c.b16 %v859, %v855
    %v1056 = vpack.c.b16 %v860, %v856
    %vm1253 = vcmask 130048
    %v1255 = vsel %vm1253, %v54, 0
    %1257 = vmatprep.subr.bf16.mxu0 %v890
    %1258 = vmatpush1.bf16.msra.mxu0 %v889
    %1259 = vmatprep.subr.bf16.mxu0 %v886
    %1260 = vmatpush1.bf16.msra.mxu0 %v885
    %1261 = vmatprep.subr.bf16.mxu0 %v882
    %1262 = vmatpush1.bf16.msra.mxu0 %v881
    %1263 = vmatprep.subr.bf16.mxu0 %v878
    %1264 = vmatpush1.bf16.msra.mxu0 %v877
    %1265 = vmatprep.subr.bf16.mxu0 %v874
    %1266 = vmatpush1.bf16.msra.mxu0 %v873
    %1267 = vmatprep.subr.bf16.mxu0 %v870
    %1268 = vmatpush1.bf16.msra.mxu0 %v869
    %1269 = vmatprep.subr.bf16.mxu0 %v866
    %1270 = vmatpush1.bf16.msra.mxu0 %v865
    %1271 = vmatprep.subr.bf16.mxu0 %v862
    %1272 = vmatpush1.bf16.msra.mxu0 %v861
    %1273 = vmatprep.subr.bf16.mxu0 %v922
    %1274 = vmatpush2.bf16.msra.mxu0 %v921
    %1275 = vmatprep.subr.bf16.mxu0 %v918
    %1276 = vmatpush2.bf16.msra.mxu0 %v917
    %1277 = vmatprep.subr.bf16.mxu0 %v914
    %1278 = vmatpush2.bf16.msra.mxu0 %v913
    %1279 = vmatprep.subr.bf16.mxu0 %v910
    %1280 = vmatpush2.bf16.msra.mxu0 %v909
    %1281 = vmatprep.subr.bf16.mxu0 %v906
    %1282 = vmatpush2.bf16.msra.mxu0 %v905
    %1283 = vmatprep.subr.bf16.mxu0 %v902
    %1284 = vmatpush2.bf16.msra.mxu0 %v901
    %1285 = vmatprep.subr.bf16.mxu0 %v898
    %1286 = vmatpush2.bf16.msra.mxu0 %v897
    %1287 = vmatprep.subr.bf16.mxu0 %v894
    %1288 = vmatpush2.bf16.msra.mxu0 %v893
    %1289 = vmatprep.mubr.bf16.mxu0 %v49
    %1290 = vmatmul.mubr.bf16.gmra.mxu0 %v48
    %v1291 = vpop.f32.mrf.mxu0
    %v1292 = vadd.f32 %v256, %v1291
    %v1293 = vpop.f32.mrf.mxu0
    %v1294 = vadd.f32 %v260, %v1293
    %v1295 = vpop.f32.mrf.mxu0
    %v1296 = vadd.f32 %v256, %v1295
    %v1297 = vpop.f32.mrf.mxu0
    %v1298 = vadd.f32 %v260, %v1297
    %1299 = vdwg.mxu0
    %1300 = vmatprep.subr.bf16.mxu0 %v954
    %1301 = vmatpush1.bf16.msra.mxu0 %v953
    %1302 = vmatprep.subr.bf16.mxu0 %v950
    %1303 = vmatpush1.bf16.msra.mxu0 %v949
    %1304 = vmatprep.subr.bf16.mxu0 %v946
    %1305 = vmatpush1.bf16.msra.mxu0 %v945
    %1306 = vmatprep.subr.bf16.mxu0 %v942
    %1307 = vmatpush1.bf16.msra.mxu0 %v941
    %1308 = vmatprep.subr.bf16.mxu0 %v938
    %1309 = vmatpush1.bf16.msra.mxu0 %v937
    %1310 = vmatprep.subr.bf16.mxu0 %v934
    %1311 = vmatpush1.bf16.msra.mxu0 %v933
    %1312 = vmatprep.subr.bf16.mxu0 %v930
    %1313 = vmatpush1.bf16.msra.mxu0 %v929
    %1314 = vmatprep.subr.bf16.mxu0 %v926
    %1315 = vmatpush1.bf16.msra.mxu0 %v925
    %1316 = vmatprep.subr.bf16.mxu0 %v986
    %1317 = vmatpush2.bf16.msra.mxu0 %v985
    %1318 = vmatprep.subr.bf16.mxu0 %v982
    %1319 = vmatpush2.bf16.msra.mxu0 %v981
    %1320 = vmatprep.subr.bf16.mxu0 %v978
    %1321 = vmatpush2.bf16.msra.mxu0 %v977
    %1322 = vmatprep.subr.bf16.mxu0 %v974
    %1323 = vmatpush2.bf16.msra.mxu0 %v973
    %1324 = vmatprep.subr.bf16.mxu0 %v970
    %1325 = vmatpush2.bf16.msra.mxu0 %v969
    %1326 = vmatprep.subr.bf16.mxu0 %v966
    %1327 = vmatpush2.bf16.msra.mxu0 %v965
    %1328 = vmatprep.subr.bf16.mxu0 %v962
    %1329 = vmatpush2.bf16.msra.mxu0 %v961
    %1330 = vmatprep.subr.bf16.mxu0 %v958
    %1331 = vmatpush2.bf16.msra.mxu0 %v957
    %1332 = vmatprep.mubr.bf16.mxu0 %v51
    %1333 = vmatmul.mubr.bf16.gmra.mxu0 %v50
    %v1334 = vpop.f32.mrf.mxu0
    %v1335 = vadd.f32 %v1292, %v1334
    %v1336 = vpop.f32.mrf.mxu0
    %v1337 = vadd.f32 %v1294, %v1336
    %v1338 = vpop.f32.mrf.mxu0
    %v1339 = vadd.f32 %v1296, %v1338
    %v1340 = vpop.f32.mrf.mxu0
    %v1341 = vadd.f32 %v1298, %v1340
    %1342 = vdwg.mxu0
    %1343 = vmatprep.subr.bf16.mxu0 %v1018
    %1344 = vmatpush1.bf16.msra.mxu0 %v1017
    %1345 = vmatprep.subr.bf16.mxu0 %v1014
    %1346 = vmatpush1.bf16.msra.mxu0 %v1013
    %1347 = vmatprep.subr.bf16.mxu0 %v1010
    %1348 = vmatpush1.bf16.msra.mxu0 %v1009
    %1349 = vmatprep.subr.bf16.mxu0 %v1006
    %1350 = vmatpush1.bf16.msra.mxu0 %v1005
    %1351 = vmatprep.subr.bf16.mxu0 %v1002
    %1352 = vmatpush1.bf16.msra.mxu0 %v1001
    %1353 = vmatprep.subr.bf16.mxu0 %v998
    %1354 = vmatpush1.bf16.msra.mxu0 %v997
    %1355 = vmatprep.subr.bf16.mxu0 %v994
    %1356 = vmatpush1.bf16.msra.mxu0 %v993
    %1357 = vmatprep.subr.bf16.mxu0 %v990
    %1358 = vmatpush1.bf16.msra.mxu0 %v989
    %1359 = vmatprep.subr.bf16.mxu0 %v1050
    %1360 = vmatpush2.bf16.msra.mxu0 %v1049
    %1361 = vmatprep.subr.bf16.mxu0 %v1046
    %1362 = vmatpush2.bf16.msra.mxu0 %v1045
    %1363 = vmatprep.subr.bf16.mxu0 %v1042
    %1364 = vmatpush2.bf16.msra.mxu0 %v1041
    %1365 = vmatprep.subr.bf16.mxu0 %v1038
    %1366 = vmatpush2.bf16.msra.mxu0 %v1037
    %1367 = vmatprep.subr.bf16.mxu0 %v1034
    %1368 = vmatpush2.bf16.msra.mxu0 %v1033
    %1369 = vmatprep.subr.bf16.mxu0 %v1030
    %1370 = vmatpush2.bf16.msra.mxu0 %v1029
    %1371 = vmatprep.subr.bf16.mxu0 %v1026
    %1372 = vmatpush2.bf16.msra.mxu0 %v1025
    %1373 = vmatprep.subr.bf16.mxu0 %v1022
    %1374 = vmatpush2.bf16.msra.mxu0 %v1021
    %1375 = vmatprep.mubr.bf16.mxu0 %v53
    %1376 = vmatmul.mubr.bf16.gmra.mxu0 %v52
    %v1377 = vpop.f32.mrf.mxu0
    %v1378 = vadd.f32 %v1335, %v1377
    %v1379 = vpop.f32.mrf.mxu0
    %v1380 = vadd.f32 %v1337, %v1379
    %v1381 = vpop.f32.mrf.mxu0
    %v1382 = vadd.f32 %v1339, %v1381
    %v1383 = vpop.f32.mrf.mxu0
    %v1384 = vadd.f32 %v1341, %v1383
    %1385 = vdwg.mxu0
    %1386 = vmatprep.subr.bf16.mxu0 0
    %1387 = vmatpush1.bf16.msra.mxu0 0
    %1388 = vmatprep.subr.bf16.mxu0 0
    %1389 = vmatpush1.bf16.msra.mxu0 0
    %1390 = vmatprep.subr.bf16.mxu0 0
    %1391 = vmatpush1.bf16.msra.mxu0 0
    %1392 = vmatprep.subr.bf16.mxu0 0
    %1393 = vmatpush1.bf16.msra.mxu0 0
    %1394 = vmatprep.subr.bf16.mxu0 0
    %1395 = vmatpush1.bf16.msra.mxu0 0
    %1396 = vmatprep.subr.bf16.mxu0 0
    %1397 = vmatpush1.bf16.msra.mxu0 0
    %1398 = vmatprep.subr.bf16.mxu0 0
    %1399 = vmatpush1.bf16.msra.mxu0 0
    %1400 = vmatprep.subr.bf16.mxu0 %v1054
    %1401 = vmatpush1.bf16.msra.mxu0 %v1053
    %1402 = vmatprep.subr.bf16.mxu0 0
    %1403 = vmatpush2.bf16.msra.mxu0 0
    %1404 = vmatprep.subr.bf16.mxu0 0
    %1405 = vmatpush2.bf16.msra.mxu0 0
    %1406 = vmatprep.subr.bf16.mxu0 0
    %1407 = vmatpush2.bf16.msra.mxu0 0
    %1408 = vmatprep.subr.bf16.mxu0 0
    %1409 = vmatpush2.bf16.msra.mxu0 0
    %1410 = vmatprep.subr.bf16.mxu0 0
    %1411 = vmatpush2.bf16.msra.mxu0 0
    %1412 = vmatprep.subr.bf16.mxu0 0
    %1413 = vmatpush2.bf16.msra.mxu0 0
    %1414 = vmatprep.subr.bf16.mxu0 0
    %1415 = vmatpush2.bf16.msra.mxu0 0
    %1416 = vmatprep.subr.bf16.mxu0 0
    %1417 = vmatpush2.bf16.msra.mxu0 0
    %1418 = vmatprep.mubr.bf16.mxu0 0
    %1419 = vmatmul.mubr.bf16.gmra.mxu0 %v1255
    %v1420 = vpop.f32.mrf.mxu0
    %v1421 = vadd.f32 %v1378, %v1420
    %v1422 = vpop.f32.mrf.mxu0
    %v1423 = vadd.f32 %v1380, %v1422
    %v1424 = vpop.f32.mrf.mxu0
    %v1425 = vadd.f32 %v1382, %v1424
    %v1426 = vpop.f32.mrf.mxu0
    %v1427 = vadd.f32 %v1384, %v1426
    %1428 = vdwg.mxu0
    %1429 = vmatprep.subr.bf16.mxu0 %v892
    %1430 = vmatpush1.bf16.msra.mxu0 %v891
    %1431 = vmatprep.subr.bf16.mxu0 %v888
    %1432 = vmatpush1.bf16.msra.mxu0 %v887
    %1433 = vmatprep.subr.bf16.mxu0 %v884
    %1434 = vmatpush1.bf16.msra.mxu0 %v883
    %1435 = vmatprep.subr.bf16.mxu0 %v880
    %1436 = vmatpush1.bf16.msra.mxu0 %v879
    %1437 = vmatprep.subr.bf16.mxu0 %v876
    %1438 = vmatpush1.bf16.msra.mxu0 %v875
    %1439 = vmatprep.subr.bf16.mxu0 %v872
    %1440 = vmatpush1.bf16.msra.mxu0 %v871
    %1441 = vmatprep.subr.bf16.mxu0 %v868
    %1442 = vmatpush1.bf16.msra.mxu0 %v867
    %1443 = vmatprep.subr.bf16.mxu0 %v864
    %1444 = vmatpush1.bf16.msra.mxu0 %v863
    %1445 = vmatprep.subr.bf16.mxu0 %v924
    %1446 = vmatpush2.bf16.msra.mxu0 %v923
    %1447 = vmatprep.subr.bf16.mxu0 %v920
    %1448 = vmatpush2.bf16.msra.mxu0 %v919
    %1449 = vmatprep.subr.bf16.mxu0 %v916
    %1450 = vmatpush2.bf16.msra.mxu0 %v915
    %1451 = vmatprep.subr.bf16.mxu0 %v912
    %1452 = vmatpush2.bf16.msra.mxu0 %v911
    %1453 = vmatprep.subr.bf16.mxu0 %v908
    %1454 = vmatpush2.bf16.msra.mxu0 %v907
    %1455 = vmatprep.subr.bf16.mxu0 %v904
    %1456 = vmatpush2.bf16.msra.mxu0 %v903
    %1457 = vmatprep.subr.bf16.mxu0 %v900
    %1458 = vmatpush2.bf16.msra.mxu0 %v899
    %1459 = vmatprep.subr.bf16.mxu0 %v896
    %1460 = vmatpush2.bf16.msra.mxu0 %v895
    %1461 = vmatprep.mubr.bf16.mxu0 %v49
    %1462 = vmatmul.mubr.bf16.gmra.mxu0 %v48
    %v1463 = vpop.f32.mrf.mxu0
    %v1464 = vadd.f32 %v264, %v1463
    %v1465 = vpop.f32.mrf.mxu0
    %v1466 = vadd.f32 %v268, %v1465
    %v1467 = vpop.f32.mrf.mxu0
    %v1468 = vadd.f32 %v264, %v1467
    %v1469 = vpop.f32.mrf.mxu0
    %v1470 = vadd.f32 %v268, %v1469
    %1471 = vdwg.mxu0
    %1472 = vmatprep.subr.bf16.mxu0 %v956
    %1473 = vmatpush1.bf16.msra.mxu0 %v955
    %1474 = vmatprep.subr.bf16.mxu0 %v952
    %1475 = vmatpush1.bf16.msra.mxu0 %v951
    %1476 = vmatprep.subr.bf16.mxu0 %v948
    %1477 = vmatpush1.bf16.msra.mxu0 %v947
    %1478 = vmatprep.subr.bf16.mxu0 %v944
    %1479 = vmatpush1.bf16.msra.mxu0 %v943
    %1480 = vmatprep.subr.bf16.mxu0 %v940
    %1481 = vmatpush1.bf16.msra.mxu0 %v939
    %1482 = vmatprep.subr.bf16.mxu0 %v936
    %1483 = vmatpush1.bf16.msra.mxu0 %v935
    %1484 = vmatprep.subr.bf16.mxu0 %v932
    %1485 = vmatpush1.bf16.msra.mxu0 %v931
    %1486 = vmatprep.subr.bf16.mxu0 %v928
    %1487 = vmatpush1.bf16.msra.mxu0 %v927
    %1488 = vmatprep.subr.bf16.mxu0 %v988
    %1489 = vmatpush2.bf16.msra.mxu0 %v987
    %1490 = vmatprep.subr.bf16.mxu0 %v984
    %1491 = vmatpush2.bf16.msra.mxu0 %v983
    %1492 = vmatprep.subr.bf16.mxu0 %v980
    %1493 = vmatpush2.bf16.msra.mxu0 %v979
    %1494 = vmatprep.subr.bf16.mxu0 %v976
    %1495 = vmatpush2.bf16.msra.mxu0 %v975
    %1496 = vmatprep.subr.bf16.mxu0 %v972
    %1497 = vmatpush2.bf16.msra.mxu0 %v971
    %1498 = vmatprep.subr.bf16.mxu0 %v968
    %1499 = vmatpush2.bf16.msra.mxu0 %v967
    %1500 = vmatprep.subr.bf16.mxu0 %v964
    %1501 = vmatpush2.bf16.msra.mxu0 %v963
    %1502 = vmatprep.subr.bf16.mxu0 %v960
    %1503 = vmatpush2.bf16.msra.mxu0 %v959
    %1504 = vmatprep.mubr.bf16.mxu0 %v51
    %1505 = vmatmul.mubr.bf16.gmra.mxu0 %v50
    %v1506 = vpop.f32.mrf.mxu0
    %v1507 = vadd.f32 %v1464, %v1506
    %v1508 = vpop.f32.mrf.mxu0
    %v1509 = vadd.f32 %v1466, %v1508
    %v1510 = vpop.f32.mrf.mxu0
    %v1511 = vadd.f32 %v1468, %v1510
    %v1512 = vpop.f32.mrf.mxu0
    %v1513 = vadd.f32 %v1470, %v1512
    %1514 = vdwg.mxu0
    %1515 = vmatprep.subr.bf16.mxu0 %v1020
    %1516 = vmatpush1.bf16.msra.mxu0 %v1019
    %1517 = vmatprep.subr.bf16.mxu0 %v1016
    %1518 = vmatpush1.bf16.msra.mxu0 %v1015
    %1519 = vmatprep.subr.bf16.mxu0 %v1012
    %1520 = vmatpush1.bf16.msra.mxu0 %v1011
    %1521 = vmatprep.subr.bf16.mxu0 %v1008
    %1522 = vmatpush1.bf16.msra.mxu0 %v1007
    %1523 = vmatprep.subr.bf16.mxu0 %v1004
    %1524 = vmatpush1.bf16.msra.mxu0 %v1003
    %1525 = vmatprep.subr.bf16.mxu0 %v1000
    %1526 = vmatpush1.bf16.msra.mxu0 %v999
    %1527 = vmatprep.subr.bf16.mxu0 %v996
    %1528 = vmatpush1.bf16.msra.mxu0 %v995
    %1529 = vmatprep.subr.bf16.mxu0 %v992
    %1530 = vmatpush1.bf16.msra.mxu0 %v991
    %1531 = vmatprep.subr.bf16.mxu0 %v1052
    %1532 = vmatpush2.bf16.msra.mxu0 %v1051
    %1533 = vmatprep.subr.bf16.mxu0 %v1048
    %1534 = vmatpush2.bf16.msra.mxu0 %v1047
    %1535 = vmatprep.subr.bf16.mxu0 %v1044
    %1536 = vmatpush2.bf16.msra.mxu0 %v1043
    %1537 = vmatprep.subr.bf16.mxu0 %v1040
    %1538 = vmatpush2.bf16.msra.mxu0 %v1039
    %1539 = vmatprep.subr.bf16.mxu0 %v1036
    %1540 = vmatpush2.bf16.msra.mxu0 %v1035
    %1541 = vmatprep.subr.bf16.mxu0 %v1032
    %1542 = vmatpush2.bf16.msra.mxu0 %v1031
    %1543 = vmatprep.subr.bf16.mxu0 %v1028
    %1544 = vmatpush2.bf16.msra.mxu0 %v1027
    %1545 = vmatprep.subr.bf16.mxu0 %v1024
    %1546 = vmatpush2.bf16.msra.mxu0 %v1023
    %1547 = vmatprep.mubr.bf16.mxu0 %v53
    %1548 = vmatmul.mubr.bf16.gmra.mxu0 %v52
    %v1549 = vpop.f32.mrf.mxu0
    %v1550 = vadd.f32 %v1507, %v1549
    %v1551 = vpop.f32.mrf.mxu0
    %v1552 = vadd.f32 %v1509, %v1551
    %v1553 = vpop.f32.mrf.mxu0
    %v1554 = vadd.f32 %v1511, %v1553
    %v1555 = vpop.f32.mrf.mxu0
    %v1556 = vadd.f32 %v1513, %v1555
    %1557 = vdwg.mxu0
    %1558 = vmatprep.subr.bf16.mxu0 0
    %1559 = vmatpush1.bf16.msra.mxu0 0
    %1560 = vmatprep.subr.bf16.mxu0 0
    %1561 = vmatpush1.bf16.msra.mxu0 0
    %1562 = vmatprep.subr.bf16.mxu0 0
    %1563 = vmatpush1.bf16.msra.mxu0 0
    %1564 = vmatprep.subr.bf16.mxu0 0
    %1565 = vmatpush1.bf16.msra.mxu0 0
    %1566 = vmatprep.subr.bf16.mxu0 0
    %1567 = vmatpush1.bf16.msra.mxu0 0
    %1568 = vmatprep.subr.bf16.mxu0 0
    %1569 = vmatpush1.bf16.msra.mxu0 0
    %1570 = vmatprep.subr.bf16.mxu0 0
    %1571 = vmatpush1.bf16.msra.mxu0 0
    %1572 = vmatprep.subr.bf16.mxu0 %v1056
    %1573 = vmatpush1.bf16.msra.mxu0 %v1055
    %1574 = vmatprep.subr.bf16.mxu0 0
    %1575 = vmatpush2.bf16.msra.mxu0 0
    %1576 = vmatprep.subr.bf16.mxu0 0
    %1577 = vmatpush2.bf16.msra.mxu0 0
    %1578 = vmatprep.subr.bf16.mxu0 0
    %1579 = vmatpush2.bf16.msra.mxu0 0
    %1580 = vmatprep.subr.bf16.mxu0 0
    %1581 = vmatpush2.bf16.msra.mxu0 0
    %1582 = vmatprep.subr.bf16.mxu0 0
    %1583 = vmatpush2.bf16.msra.mxu0 0
    %1584 = vmatprep.subr.bf16.mxu0 0
    %1585 = vmatpush2.bf16.msra.mxu0 0
    %1586 = vmatprep.subr.bf16.mxu0 0
    %1587 = vmatpush2.bf16.msra.mxu0 0
    %1588 = vmatprep.subr.bf16.mxu0 0
    %1589 = vmatpush2.bf16.msra.mxu0 0
    %1590 = vmatprep.mubr.bf16.mxu0 0
    %1591 = vmatmul.mubr.bf16.gmra.mxu0 %v1255
    %v1592 = vpop.f32.mrf.mxu0
    %v1593 = vadd.f32 %v1550, %v1592
    %v1594 = vpop.f32.mrf.mxu0
    %v1595 = vadd.f32 %v1552, %v1594
    %v1596 = vpop.f32.mrf.mxu0
    %v1597 = vadd.f32 %v1554, %v1596
    %v1598 = vpop.f32.mrf.mxu0
    %v1599 = vadd.f32 %v1556, %v1598
    %1600 = vdwg.mxu0
    %v1601 = vmax.f32 %v1421, 0.0
    %v1602 = vmax.f32 %v1423, 0.0
    %v1603 = vmax.f32 %v1593, 0.0
    %v1604 = vmax.f32 %v1595, 0.0
    %v1605 = vmax.f32 %v1425, 0.0
    %v1606 = vmax.f32 %v1427, 0.0
    %v1607 = vmax.f32 %v1597, 0.0
    %v1608 = vmax.f32 %v1599, 0.0
    %v1609 = vpack.c.bf16 %v1605, %v1601
    %v1610 = vpack.c.bf16 %v1606, %v1602
    %v1611 = vpack.c.bf16 %v1607, %v1603
    %v1612 = vpack.c.bf16 %v1608, %v1604
    %v1613 = vld [vmem:[%s3] sm:$0xf]
    %v1614 = vld [vmem:[%s3 + $0x4] sm:$0xf]
    %v1615 = vld [vmem:[%s3 + $0x8] sm:$0xf]
    %v1616 = vld [vmem:[%s3 + $0xc] sm:$0xf]
    %v1617 = vld [vmem:[%s3 + $0x10] sm:$0xf]
    %v1618 = vld [vmem:[%s3 + $0x14] sm:$0xf]
    %v1619 = vld [vmem:[%s3 + $0x18] sm:$0xf]
    %v1620 = vld [vmem:[%s3 + $0x1c] sm:$0xf]
    %v1621 = vld [vmem:[%s3 + $0x20] sm:$0xf]
    %v1622 = vld [vmem:[%s3 + $0x24] sm:$0xf]
    %v1623 = vld [vmem:[%s3 + $0x28] sm:$0xf]
    %v1624 = vld [vmem:[%s3 + $0x2c] sm:$0xf]
    %v1625 = vld [vmem:[%s3 + $0x30] sm:$0xf]
    %v1626 = vld [vmem:[%s3 + $0x34] sm:$0xf]
    %v1627 = vld [vmem:[%s3 + $0x38] sm:$0xf]
    %v1628 = vld [vmem:[%s3 + $0x3c] sm:$0xf]
    %v1629 = vld [vmem:[%s3 + $0x40] sm:$0xf]
    %v1630 = vld [vmem:[%s3 + $0x44] sm:$0xf]
    %v1631 = vld [vmem:[%s3 + $0x48] sm:$0xf]
    %v1632 = vld [vmem:[%s3 + $0x4c] sm:$0xf]
    %v1633 = vld [vmem:[%s3 + $0x50] sm:$0xf]
    %v1634 = vld [vmem:[%s3 + $0x54] sm:$0xf]
    %v1635 = vld [vmem:[%s3 + $0x58] sm:$0xf]
    %v1636 = vld [vmem:[%s3 + $0x5c] sm:$0xf]
    %v1637 = vld [vmem:[%s3 + $0x60] sm:$0xf]
    %v1638 = vld [vmem:[%s3 + $0x64] sm:$0xf]
    %v1639 = vld [vmem:[%s3 + $0x68] sm:$0xf]
    %v1640 = vld [vmem:[%s3 + $0x6c] sm:$0xf]
    %v1641 = vld [vmem:[%s3 + $0x70] sm:$0xf]
    %v1642 = vld [vmem:[%s3 + $0x74] sm:$0xf]
    %v1643 = vld [vmem:[%s3 + $0x78] sm:$0xf]
    %v1644 = vld [vmem:[%s3 + $0x7c] sm:$0xf]
    %v1645 = vld [vmem:[%s3 + $0x80] sm:$0xf]
    %v1646 = vld [vmem:[%s3 + $0x84] sm:$0xf]
    %v1647 = vld [vmem:[%s3 + $0x88] sm:$0xf]
    %v1648 = vld [vmem:[%s3 + $0x8c] sm:$0xf]
    %v1649 = vld [vmem:[%s3 + $0x90] sm:$0xf]
    %v1650 = vld [vmem:[%s3 + $0x94] sm:$0xf]
    %v1651 = vld [vmem:[%s3 + $0x98] sm:$0xf]
    %v1652 = vld [vmem:[%s3 + $0x9c] sm:$0xf]
    %v1653 = vld [vmem:[%s3 + $0xa0] sm:$0xf]
    %v1654 = vld [vmem:[%s3 + $0xa4] sm:$0xf]
    %v1655 = vld [vmem:[%s3 + $0xa8] sm:$0xf]
    %v1656 = vld [vmem:[%s3 + $0xac] sm:$0xf]
    %v1657 = vld [vmem:[%s3 + $0xb0] sm:$0xf]
    %v1658 = vld [vmem:[%s3 + $0xb4] sm:$0xf]
    %v1659 = vld [vmem:[%s3 + $0xb8] sm:$0xf]
    %v1660 = vld [vmem:[%s3 + $0xbc] sm:$0xf]
    %v1661 = vld [vmem:[%s3 + $0xc0] sm:$0xf]
    %v1662 = vld [vmem:[%s4] sm:$0x1]
    %v1664 = vlaneseq
    %v1665 = vshrl.u32 %v1664, 7
    %v1666 = vsub.s32 0, %v1665
    %v1667 = vrot.slane %v1662, %v1666
    %v1718 = vunpack.c.l.b16 %v1613
    %v1719 = vunpack.c.l.b16 %v1614
    %v1720 = vunpack.c.l.b16 %v1615
    %v1721 = vunpack.c.l.b16 %v1616
    %v1722 = vunpack.c.l.b16 %v1617
    %v1723 = vunpack.c.l.b16 %v1618
    %v1724 = vunpack.c.l.b16 %v1619
    %v1725 = vunpack.c.l.b16 %v1620
    %v1726 = vunpack.c.l.b16 %v1621
    %v1727 = vunpack.c.l.b16 %v1622
    %v1728 = vunpack.c.l.b16 %v1623
    %v1729 = vunpack.c.l.b16 %v1624
    %v1730 = vunpack.c.l.b16 %v1625
    %v1731 = vunpack.c.l.b16 %v1626
    %v1732 = vunpack.c.l.b16 %v1627
    %v1733 = vunpack.c.l.b16 %v1628
    %v1734 = vunpack.c.l.b16 %v1629
    %v1735 = vunpack.c.l.b16 %v1630
    %v1736 = vunpack.c.l.b16 %v1631
    %v1737 = vunpack.c.l.b16 %v1632
    %v1738 = vunpack.c.l.b16 %v1633
    %v1739 = vunpack.c.l.b16 %v1634
    %v1740 = vunpack.c.l.b16 %v1635
    %v1741 = vunpack.c.l.b16 %v1636
    %v1742 = vunpack.c.l.b16 %v1637
    %v1743 = vunpack.c.l.b16 %v1638
    %v1744 = vunpack.c.l.b16 %v1639
    %v1745 = vunpack.c.l.b16 %v1640
    %v1746 = vunpack.c.l.b16 %v1641
    %v1747 = vunpack.c.l.b16 %v1642
    %v1748 = vunpack.c.l.b16 %v1643
    %v1749 = vunpack.c.l.b16 %v1644
    %v1750 = vunpack.c.l.b16 %v1645
    %v1751 = vunpack.c.l.b16 %v1646
    %v1752 = vunpack.c.l.b16 %v1647
    %v1753 = vunpack.c.l.b16 %v1648
    %v1754 = vunpack.c.l.b16 %v1649
    %v1755 = vunpack.c.l.b16 %v1650
    %v1756 = vunpack.c.l.b16 %v1651
    %v1757 = vunpack.c.l.b16 %v1652
    %v1758 = vunpack.c.l.b16 %v1653
    %v1759 = vunpack.c.l.b16 %v1654
    %v1760 = vunpack.c.l.b16 %v1655
    %v1761 = vunpack.c.l.b16 %v1656
    %v1762 = vunpack.c.l.b16 %v1657
    %v1763 = vunpack.c.l.b16 %v1658
    %v1764 = vunpack.c.l.b16 %v1659
    %v1765 = vunpack.c.l.b16 %v1660
    %v1766 = vunpack.c.l.b16 %v1661
    %v1767 = vpack.c.b16 %v1719, %v1718
    %v1768 = vpack.c.b16 %v1721, %v1720
    %v1769 = vpack.c.b16 %v1723, %v1722
    %v1770 = vpack.c.b16 %v1725, %v1724
    %v1771 = vpack.c.b16 %v1727, %v1726
    %v1772 = vpack.c.b16 %v1729, %v1728
    %v1773 = vpack.c.b16 %v1731, %v1730
    %v1774 = vpack.c.b16 %v1733, %v1732
    %v1775 = vpack.c.b16 %v1735, %v1734
    %v1776 = vpack.c.b16 %v1737, %v1736
    %v1777 = vpack.c.b16 %v1739, %v1738
    %v1778 = vpack.c.b16 %v1741, %v1740
    %v1779 = vpack.c.b16 %v1743, %v1742
    %v1780 = vpack.c.b16 %v1745, %v1744
    %v1781 = vpack.c.b16 %v1747, %v1746
    %v1782 = vpack.c.b16 %v1749, %v1748
    %v1783 = vpack.c.b16 %v1751, %v1750
    %v1784 = vpack.c.b16 %v1753, %v1752
    %v1785 = vpack.c.b16 %v1755, %v1754
    %v1786 = vpack.c.b16 %v1757, %v1756
    %v1787 = vpack.c.b16 %v1759, %v1758
    %v1788 = vpack.c.b16 %v1761, %v1760
    %v1789 = vpack.c.b16 %v1763, %v1762
    %v1790 = vpack.c.b16 %v1765, %v1764
    %v1791 = vpack.c.b16 %v1766, %v1766
    %vm1816 = vcmask 64512
    %v1818 = vsel %vm1816, %v1612, 0
    %vm1820 = vcmask 1043456
    %v1822 = vsel %vm1820, %v1791, 0
    %1824 = vmatprep.subr.bf16.mxu0 0
    %1825 = vmatpush1.bf16.msra.mxu0 %v1774
    %1826 = vmatprep.subr.bf16.mxu0 0
    %1827 = vmatpush1.bf16.msra.mxu0 %v1773
    %1828 = vmatprep.subr.bf16.mxu0 0
    %1829 = vmatpush1.bf16.msra.mxu0 %v1772
    %1830 = vmatprep.subr.bf16.mxu0 0
    %1831 = vmatpush1.bf16.msra.mxu0 %v1771
    %1832 = vmatprep.subr.bf16.mxu0 0
    %1833 = vmatpush1.bf16.msra.mxu0 %v1770
    %1834 = vmatprep.subr.bf16.mxu0 0
    %1835 = vmatpush1.bf16.msra.mxu0 %v1769
    %1836 = vmatprep.subr.bf16.mxu0 0
    %1837 = vmatpush1.bf16.msra.mxu0 %v1768
    %1838 = vmatprep.subr.bf16.mxu0 0
    %1839 = vmatpush1.bf16.msra.mxu0 %v1767
    %1840 = vmatprep.subr.bf16.mxu0 0
    %1841 = vmatpush2.bf16.msra.mxu0 %v1782
    %1842 = vmatprep.subr.bf16.mxu0 0
    %1843 = vmatpush2.bf16.msra.mxu0 %v1781
    %1844 = vmatprep.subr.bf16.mxu0 0
    %1845 = vmatpush2.bf16.msra.mxu0 %v1780
    %1846 = vmatprep.subr.bf16.mxu0 0
    %1847 = vmatpush2.bf16.msra.mxu0 %v1779
    %1848 = vmatprep.subr.bf16.mxu0 0
    %1849 = vmatpush2.bf16.msra.mxu0 %v1778
    %1850 = vmatprep.subr.bf16.mxu0 0
    %1851 = vmatpush2.bf16.msra.mxu0 %v1777
    %1852 = vmatprep.subr.bf16.mxu0 0
    %1853 = vmatpush2.bf16.msra.mxu0 %v1776
    %1854 = vmatprep.subr.bf16.mxu0 0
    %1855 = vmatpush2.bf16.msra.mxu0 %v1775
    %1856 = vmatprep.mubr.bf16.mxu0 %v1610
    %1857 = vmatmul.mubr.bf16.gmra.mxu0 %v1609
    %v1858 = vpop.f32.mrf.mxu0
    %v1859 = vadd.f32 %v1667, %v1858
    %v1860 = vpop.f32.mrf.mxu0
    %v1861 = vpop.f32.mrf.mxu0
    %v1862 = vadd.f32 %v1667, %v1861
    %v1863 = vpop.f32.mrf.mxu0
    %1864 = vdwg.mxu0
    %1865 = vmatprep.subr.bf16.mxu0 0
    %1866 = vmatpush1.bf16.msra.mxu0 %v1790
    %1867 = vmatprep.subr.bf16.mxu0 0
    %1868 = vmatpush1.bf16.msra.mxu0 %v1789
    %1869 = vmatprep.subr.bf16.mxu0 0
    %1870 = vmatpush1.bf16.msra.mxu0 %v1788
    %1871 = vmatprep.subr.bf16.mxu0 0
    %1872 = vmatpush1.bf16.msra.mxu0 %v1787
    %1873 = vmatprep.subr.bf16.mxu0 0
    %1874 = vmatpush1.bf16.msra.mxu0 %v1786
    %1875 = vmatprep.subr.bf16.mxu0 0
    %1876 = vmatpush1.bf16.msra.mxu0 %v1785
    %1877 = vmatprep.subr.bf16.mxu0 0
    %1878 = vmatpush1.bf16.msra.mxu0 %v1784
    %1879 = vmatprep.subr.bf16.mxu0 0
    %1880 = vmatpush1.bf16.msra.mxu0 %v1783
    %1881 = vmatprep.subr.bf16.mxu0 0
    %1882 = vmatpush2.bf16.msra.mxu0 0
    %1883 = vmatprep.subr.bf16.mxu0 0
    %1884 = vmatpush2.bf16.msra.mxu0 0
    %1885 = vmatprep.subr.bf16.mxu0 0
    %1886 = vmatpush2.bf16.msra.mxu0 0
    %1887 = vmatprep.subr.bf16.mxu0 0
    %1888 = vmatpush2.bf16.msra.mxu0 0
    %1889 = vmatprep.subr.bf16.mxu0 0
    %1890 = vmatpush2.bf16.msra.mxu0 0
    %1891 = vmatprep.subr.bf16.mxu0 0
    %1892 = vmatpush2.bf16.msra.mxu0 0
    %1893 = vmatprep.subr.bf16.mxu0 0
    %1894 = vmatpush2.bf16.msra.mxu0 0
    %1895 = vmatprep.subr.bf16.mxu0 0
    %1896 = vmatpush2.bf16.msra.mxu0 %v1822
    %1897 = vmatprep.mubr.bf16.mxu0 %v1818
    %1898 = vmatmul.mubr.bf16.gmra.mxu0 %v1611
    %v1899 = vpop.f32.mrf.mxu0
    %v1900 = vadd.f32 %v1859, %v1899
    %v1901 = vpop.f32.mrf.mxu0
    %v1902 = vpop.f32.mrf.mxu0
    %v1903 = vadd.f32 %v1862, %v1902
    %v1904 = vpop.f32.mrf.mxu0
    %1905 = vdwg.mxu0
    %v1906 = vmax.f32 %v1900, 0.0
    %v1907 = vmax.f32 %v1903, 0.0
    %v1908 = vpack.c.bf16 %v1907, %v1906
    %v1909 = vld [vmem:[%s5] sm:$0xff]
    %v1910 = vld [vmem:[%s5 + $0x8] sm:$0xff]
    %v1911 = vld [vmem:[%s6] sm:$0xf]
    %v1913 = vlaneseq
    %v1914 = vshrl.u32 %v1913, 7
    %v1915 = vsub.s32 0, %v1914
    %v1916 = vrot.slane %v1911, %v1915
    %v1917 = vlaneseq
    %v1918 = vshrl.u32 %v1917, 7
    %v1919 = vsub.s32 1, %v1918
    %v1920 = vrot.slane %v1911, %v1919
    %v1921 = vlaneseq
    %v1922 = vshrl.u32 %v1921, 7
    %v1923 = vsub.s32 2, %v1922
    %v1924 = vrot.slane %v1911, %v1923
    %v1925 = vlaneseq
    %v1926 = vshrl.u32 %v1925, 7
    %v1927 = vsub.s32 3, %v1926
    %v1928 = vrot.slane %v1911, %v1927
    %v1935 = vunpack.c.l.b16 %v1909
    %v1936 = vunpack.c.h.b16 %v1909
    %v1937 = vunpack.c.l.b16 %v1910
    %v1938 = vunpack.c.h.b16 %v1910
    %v1939 = vpack.c.b16 %v1935, %v1935
    %v1940 = vpack.c.b16 %v1936, %v1936
    %v1941 = vpack.c.b16 %v1937, %v1937
    %v1942 = vpack.c.b16 %v1938, %v1938
    %v1944 = vsel %vm1816, %v1908, 0
    %v1947 = vsel %vm1820, %v1939, 0
    %v1950 = vsel %vm1820, %v1940, 0
    %v1953 = vsel %vm1820, %v1941, 0
    %v1956 = vsel %vm1820, %v1942, 0
    %1958 = vmatprep.subr.bf16.mxu0 0
    %1959 = vmatpush1.bf16.msra.mxu0 0
    %1960 = vmatprep.subr.bf16.mxu0 0
    %1961 = vmatpush1.bf16.msra.mxu0 0
    %1962 = vmatprep.subr.bf16.mxu0 0
    %1963 = vmatpush1.bf16.msra.mxu0 0
    %1964 = vmatprep.subr.bf16.mxu0 0
    %1965 = vmatpush1.bf16.msra.mxu0 0
    %1966 = vmatprep.subr.bf16.mxu0 0
    %1967 = vmatpush1.bf16.msra.mxu0 0
    %1968 = vmatprep.subr.bf16.mxu0 0
    %1969 = vmatpush1.bf16.msra.mxu0 0
    %1970 = vmatprep.subr.bf16.mxu0 0
    %1971 = vmatpush1.bf16.msra.mxu0 0
    %1972 = vmatprep.subr.bf16.mxu0 %v1950
    %1973 = vmatpush1.bf16.msra.mxu0 %v1947
    %1974 = vmatprep.subr.bf16.mxu0 0
    %1975 = vmatpush2.bf16.msra.mxu0 0
    %1976 = vmatprep.subr.bf16.mxu0 0
    %1977 = vmatpush2.bf16.msra.mxu0 0
    %1978 = vmatprep.subr.bf16.mxu0 0
    %1979 = vmatpush2.bf16.msra.mxu0 0
    %1980 = vmatprep.subr.bf16.mxu0 0
    %1981 = vmatpush2.bf16.msra.mxu0 0
    %1982 = vmatprep.subr.bf16.mxu0 0
    %1983 = vmatpush2.bf16.msra.mxu0 0
    %1984 = vmatprep.subr.bf16.mxu0 0
    %1985 = vmatpush2.bf16.msra.mxu0 0
    %1986 = vmatprep.subr.bf16.mxu0 0
    %1987 = vmatpush2.bf16.msra.mxu0 0
    %1988 = vmatprep.subr.bf16.mxu0 0
    %1989 = vmatpush2.bf16.msra.mxu0 0
    %1990 = vmatprep.mubr.bf16.mxu0 0
    %1991 = vmatmul.mubr.bf16.gmra.mxu0 %v1944
    %v1992 = vpop.f32.mrf.mxu0
    %v1993 = vadd.f32 %v1916, %v1992
    %v1994 = vpop.f32.mrf.mxu0
    %v1995 = vadd.f32 %v1920, %v1994
    %v1996 = vpop.f32.mrf.mxu0
    %v1997 = vadd.f32 %v1916, %v1996
    %v1998 = vpop.f32.mrf.mxu0
    %v1999 = vadd.f32 %v1920, %v1998
    %2000 = vdwg.mxu0
    %2001 = vmatprep.subr.bf16.mxu0 0
    %2002 = vmatpush1.bf16.msra.mxu0 0
    %2003 = vmatprep.subr.bf16.mxu0 0
    %2004 = vmatpush1.bf16.msra.mxu0 0
    %2005 = vmatprep.subr.bf16.mxu0 0
    %2006 = vmatpush1.bf16.msra.mxu0 0
    %2007 = vmatprep.subr.bf16.mxu0 0
    %2008 = vmatpush1.bf16.msra.mxu0 0
    %2009 = vmatprep.subr.bf16.mxu0 0
    %2010 = vmatpush1.bf16.msra.mxu0 0
    %2011 = vmatprep.subr.bf16.mxu0 0
    %2012 = vmatpush1.bf16.msra.mxu0 0
    %2013 = vmatprep.subr.bf16.mxu0 0
    %2014 = vmatpush1.bf16.msra.mxu0 0
    %2015 = vmatprep.subr.bf16.mxu0 %v1956
    %2016 = vmatpush1.bf16.msra.mxu0 %v1953
    %2017 = vmatprep.subr.bf16.mxu0 0
    %2018 = vmatpush2.bf16.msra.mxu0 0
    %2019 = vmatprep.subr.bf16.mxu0 0
    %2020 = vmatpush2.bf16.msra.mxu0 0
    %2021 = vmatprep.subr.bf16.mxu0 0
    %2022 = vmatpush2.bf16.msra.mxu0 0
    %2023 = vmatprep.subr.bf16.mxu0 0
    %2024 = vmatpush2.bf16.msra.mxu0 0
    %2025 = vmatprep.subr.bf16.mxu0 0
    %2026 = vmatpush2.bf16.msra.mxu0 0
    %2027 = vmatprep.subr.bf16.mxu0 0
    %2028 = vmatpush2.bf16.msra.mxu0 0
    %2029 = vmatprep.subr.bf16.mxu0 0
    %2030 = vmatpush2.bf16.msra.mxu0 0
    %2031 = vmatprep.subr.bf16.mxu0 0
    %2032 = vmatpush2.bf16.msra.mxu0 0
    %2033 = vmatprep.mubr.bf16.mxu0 0
    %2034 = vmatmul.mubr.bf16.gmra.mxu0 %v1944
    %v2035 = vpop.f32.mrf.mxu0
    %v2036 = vadd.f32 %v1924, %v2035
    %v2037 = vpop.f32.mrf.mxu0
    %v2038 = vadd.f32 %v1928, %v2037
    %v2039 = vpop.f32.mrf.mxu0
    %v2040 = vadd.f32 %v1924, %v2039
    %v2041 = vpop.f32.mrf.mxu0
    %v2042 = vadd.f32 %v1928, %v2041
    %2043 = vdwg.mxu0
    %v2044 = vmax.f32 %v1993, 0.0
    %v2045 = vmax.f32 %v1995, 0.0
    %v2046 = vmax.f32 %v2036, 0.0
    %v2047 = vmax.f32 %v2038, 0.0
    %v2048 = vmax.f32 %v1997, 0.0
    %v2049 = vmax.f32 %v1999, 0.0
    %v2050 = vmax.f32 %v2040, 0.0
    %v2051 = vmax.f32 %v2042, 0.0
    %v2052 = vpack.c.bf16 %v2048, %v2044
    %v2053 = vpack.c.bf16 %v2049, %v2045
    %v2054 = vpack.c.bf16 %v2050, %v2046
    %v2055 = vpack.c.bf16 %v2051, %v2047
    %v2056 = vld [vmem:[%s7] sm:$0xff]
    %v2057 = vld [vmem:[%s7 + $0x8] sm:$0xff]
    %v2058 = vld [vmem:[%s7 + $0x10] sm:$0xff]
    %v2059 = vld [vmem:[%s7 + $0x18] sm:$0xf]
    %v2060 = vld [vmem:[%s7 + $0x1c] sm:$0xff]
    %v2061 = vld [vmem:[%s7 + $0x24] sm:$0xff]
    %v2062 = vld [vmem:[%s7 + $0x2c] sm:$0xff]
    %v2063 = vld [vmem:[%s7 + $0x34] sm:$0xf]
    %v2064 = vld [vmem:[%s7 + $0x38] sm:$0xff]
    %v2065 = vld [vmem:[%s7 + $0x40] sm:$0xff]
    %v2066 = vld [vmem:[%s7 + $0x48] sm:$0xff]
    %v2067 = vld [vmem:[%s7 + $0x50] sm:$0xf]
    %v2068 = vld [vmem:[%s7 + $0x54] sm:$0xff]
    %v2069 = vld [vmem:[%s7 + $0x5c] sm:$0xff]
    %v2070 = vld [vmem:[%s7 + $0x64] sm:$0xff]
    %v2071 = vld [vmem:[%s7 + $0x6c] sm:$0xf]
    %v2072 = vld [vmem:[%s7 + $0x70] sm:$0xff]
    %v2073 = vld [vmem:[%s7 + $0x78] sm:$0xff]
    %v2074 = vld [vmem:[%s7 + $0x80] sm:$0xff]
    %v2075 = vld [vmem:[%s7 + $0x88] sm:$0xf]
    %v2076 = vld [vmem:[%s7 + $0x8c] sm:$0xff]
    %v2077 = vld [vmem:[%s7 + $0x94] sm:$0xff]
    %v2078 = vld [vmem:[%s7 + $0x9c] sm:$0xff]
    %v2079 = vld [vmem:[%s7 + $0xa4] sm:$0xf]
    %v2080 = vld [vmem:[%s7 + $0xa8] sm:$0xff]
    %v2081 = vld [vmem:[%s7 + $0xb0] sm:$0xff]
    %v2082 = vld [vmem:[%s7 + $0xb8] sm:$0xff]
    %v2083 = vld [vmem:[%s7 + $0xc0] sm:$0xf]
    %v2084 = vld [vmem:[%s7 + $0xc4] sm:$0xff]
    %v2085 = vld [vmem:[%s7 + $0xcc] sm:$0xff]
    %v2086 = vld [vmem:[%s7 + $0xd4] sm:$0xff]
    %v2087 = vld [vmem:[%s7 + $0xdc] sm:$0xf]
    %v2088 = vld [vmem:[%s7 + $0xe0] sm:$0xff]
    %v2089 = vld [vmem:[%s7 + $0xe8] sm:$0xff]
    %v2090 = vld [vmem:[%s7 + $0xf0] sm:$0xff]
    %v2091 = vld [vmem:[%s7 + $0xf8] sm:$0xf]
    %v2092 = vld [vmem:[%s7 + $0xfc] sm:$0xff]
    %v2093 = vld [vmem:[%s7 + $0x104] sm:$0xff]
    %v2094 = vld [vmem:[%s7 + $0x10c] sm:$0xff]
    %v2095 = vld [vmem:[%s7 + $0x114] sm:$0xf]
    %v2096 = vld [vmem:[%s7 + $0x118] sm:$0xff]
    %v2097 = vld [vmem:[%s7 + $0x120] sm:$0xff]
    %v2098 = vld [vmem:[%s7 + $0x128] sm:$0xff]
    %v2099 = vld [vmem:[%s7 + $0x130] sm:$0xf]
    %v2100 = vld [vmem:[%s7 + $0x134] sm:$0xff]
    %v2101 = vld [vmem:[%s7 + $0x13c] sm:$0xff]
    %v2102 = vld [vmem:[%s7 + $0x144] sm:$0xff]
    %v2103 = vld [vmem:[%s7 + $0x14c] sm:$0xf]
    %v2104 = vld [vmem:[%s7 + $0x150] sm:$0xff]
    %v2105 = vld [vmem:[%s7 + $0x158] sm:$0xff]
    %v2106 = vld [vmem:[%s7 + $0x160] sm:$0xff]
    %v2107 = vld [vmem:[%s7 + $0x168] sm:$0xf]
    %v2108 = vld [vmem:[%s7 + $0x16c] sm:$0xff]
    %v2109 = vld [vmem:[%s7 + $0x174] sm:$0xff]
    %v2110 = vld [vmem:[%s7 + $0x17c] sm:$0xff]
    %v2111 = vld [vmem:[%s7 + $0x184] sm:$0xf]
    %v2112 = vld [vmem:[%s7 + $0x188] sm:$0xff]
    %v2113 = vld [vmem:[%s7 + $0x190] sm:$0xff]
    %v2114 = vld [vmem:[%s7 + $0x198] sm:$0xff]
    %v2115 = vld [vmem:[%s7 + $0x1a0] sm:$0xf]
    %v2116 = vld [vmem:[%s7 + $0x1a4] sm:$0xff]
    %v2117 = vld [vmem:[%s7 + $0x1ac] sm:$0xff]
    %v2118 = vld [vmem:[%s7 + $0x1b4] sm:$0xff]
    %v2119 = vld [vmem:[%s7 + $0x1bc] sm:$0xf]
    %v2120 = vld [vmem:[%s7 + $0x1c0] sm:$0xff]
    %v2121 = vld [vmem:[%s7 + $0x1c8] sm:$0xff]
    %v2122 = vld [vmem:[%s7 + $0x1d0] sm:$0xff]
    %v2123 = vld [vmem:[%s7 + $0x1d8] sm:$0xf]
    %v2124 = vld [vmem:[%s7 + $0x1dc] sm:$0xff]
    %v2125 = vld [vmem:[%s7 + $0x1e4] sm:$0xff]
    %v2126 = vld [vmem:[%s7 + $0x1ec] sm:$0xff]
    %v2127 = vld [vmem:[%s7 + $0x1f4] sm:$0xf]
    %v2128 = vld [vmem:[%s7 + $0x1f8] sm:$0xff]
    %v2129 = vld [vmem:[%s7 + $0x200] sm:$0xff]
    %v2130 = vld [vmem:[%s7 + $0x208] sm:$0xff]
    %v2131 = vld [vmem:[%s7 + $0x210] sm:$0xf]
    %v2132 = vld [vmem:[%s7 + $0x214] sm:$0xff]
    %v2133 = vld [vmem:[%s7 + $0x21c] sm:$0xff]
    %v2134 = vld [vmem:[%s7 + $0x224] sm:$0xff]
    %v2135 = vld [vmem:[%s7 + $0x22c] sm:$0xf]
    %v2136 = vld [vmem:[%s7 + $0x230] sm:$0xff]
    %v2137 = vld [vmem:[%s7 + $0x238] sm:$0xff]
    %v2138 = vld [vmem:[%s7 + $0x240] sm:$0xff]
    %v2139 = vld [vmem:[%s7 + $0x248] sm:$0xf]
    %v2140 = vld [vmem:[%s7 + $0x24c] sm:$0xff]
    %v2141 = vld [vmem:[%s7 + $0x254] sm:$0xff]
    %v2142 = vld [vmem:[%s7 + $0x25c] sm:$0xff]
    %v2143 = vld [vmem:[%s7 + $0x264] sm:$0xf]
    %v2144 = vld [vmem:[%s7 + $0x268] sm:$0xff]
    %v2145 = vld [vmem:[%s7 + $0x270] sm:$0xff]
    %v2146 = vld [vmem:[%s7 + $0x278] sm:$0xff]
    %v2147 = vld [vmem:[%s7 + $0x280] sm:$0xf]
    %v2148 = vld [vmem:[%s7 + $0x284] sm:$0xff]
    %v2149 = vld [vmem:[%s7 + $0x28c] sm:$0xff]
    %v2150 = vld [vmem:[%s7 + $0x294] sm:$0xff]
    %v2151 = vld [vmem:[%s7 + $0x29c] sm:$0xf]
    %v2152 = vld [vmem:[%s7 + $0x2a0] sm:$0xff]
    %v2153 = vld [vmem:[%s7 + $0x2a8] sm:$0xff]
    %v2154 = vld [vmem:[%s7 + $0x2b0] sm:$0xff]
    %v2155 = vld [vmem:[%s7 + $0x2b8] sm:$0xf]
    %v2156 = vld [vmem:[%s7 + $0x2bc] sm:$0xff]
    %v2157 = vld [vmem:[%s7 + $0x2c4] sm:$0xff]
    %v2158 = vld [vmem:[%s7 + $0x2cc] sm:$0xff]
    %v2159 = vld [vmem:[%s7 + $0x2d4] sm:$0xf]
    %v2160 = vld [vmem:[%s7 + $0x2d8] sm:$0xff]
    %v2161 = vld [vmem:[%s7 + $0x2e0] sm:$0xff]
    %v2162 = vld [vmem:[%s7 + $0x2e8] sm:$0xff]
    %v2163 = vld [vmem:[%s7 + $0x2f0] sm:$0xf]
    %v2164 = vld [vmem:[%s7 + $0x2f4] sm:$0xff]
    %v2165 = vld [vmem:[%s7 + $0x2fc] sm:$0xff]
    %v2166 = vld [vmem:[%s7 + $0x304] sm:$0xff]
    %v2167 = vld [vmem:[%s7 + $0x30c] sm:$0xf]
    %v2168 = vld [vmem:[%s7 + $0x310] sm:$0xff]
    %v2169 = vld [vmem:[%s7 + $0x318] sm:$0xff]
    %v2170 = vld [vmem:[%s7 + $0x320] sm:$0xff]
    %v2171 = vld [vmem:[%s7 + $0x328] sm:$0xf]
    %v2172 = vld [vmem:[%s7 + $0x32c] sm:$0xff]
    %v2173 = vld [vmem:[%s7 + $0x334] sm:$0xff]
    %v2174 = vld [vmem:[%s7 + $0x33c] sm:$0xff]
    %v2175 = vld [vmem:[%s7 + $0x344] sm:$0xf]
    %v2176 = vld [vmem:[%s7 + $0x348] sm:$0xff]
    %v2177 = vld [vmem:[%s7 + $0x350] sm:$0xff]
    %v2178 = vld [vmem:[%s7 + $0x358] sm:$0xff]
    %v2179 = vld [vmem:[%s7 + $0x360] sm:$0xf]
    %v2180 = vld [vmem:[%s7 + $0x364] sm:$0xff]
    %v2181 = vld [vmem:[%s7 + $0x36c] sm:$0xff]
    %v2182 = vld [vmem:[%s7 + $0x374] sm:$0xff]
    %v2183 = vld [vmem:[%s7 + $0x37c] sm:$0xf]
    %v2184 = vld [vmem:[%s7 + $0x380] sm:$0xff]
    %v2185 = vld [vmem:[%s7 + $0x388] sm:$0xff]
    %v2186 = vld [vmem:[%s7 + $0x390] sm:$0xff]
    %v2187 = vld [vmem:[%s7 + $0x398] sm:$0xf]
    %v2188 = vld [vmem:[%s7 + $0x39c] sm:$0xff]
    %v2189 = vld [vmem:[%s7 + $0x3a4] sm:$0xff]
    %v2190 = vld [vmem:[%s7 + $0x3ac] sm:$0xff]
    %v2191 = vld [vmem:[%s7 + $0x3b4] sm:$0xf]
    %v2192 = vld [vmem:[%s7 + $0x3b8] sm:$0xff]
    %v2193 = vld [vmem:[%s7 + $0x3c0] sm:$0xff]
    %v2194 = vld [vmem:[%s7 + $0x3c8] sm:$0xff]
    %v2195 = vld [vmem:[%s7 + $0x3d0] sm:$0xf]
    %v2196 = vld [vmem:[%s7 + $0x3d4] sm:$0xff]
    %v2197 = vld [vmem:[%s7 + $0x3dc] sm:$0xff]
    %v2198 = vld [vmem:[%s7 + $0x3e4] sm:$0xff]
    %v2199 = vld [vmem:[%s7 + $0x3ec] sm:$0xf]
    %v2200 = vld [vmem:[%s7 + $0x3f0] sm:$0xff]
    %v2201 = vld [vmem:[%s7 + $0x3f8] sm:$0xff]
    %v2202 = vld [vmem:[%s7 + $0x400] sm:$0xff]
    %v2203 = vld [vmem:[%s7 + $0x408] sm:$0xf]
    %v2204 = vld [vmem:[%s7 + $0x40c] sm:$0xff]
    %v2205 = vld [vmem:[%s7 + $0x414] sm:$0xff]
    %v2206 = vld [vmem:[%s7 + $0x41c] sm:$0xff]
    %v2207 = vld [vmem:[%s7 + $0x424] sm:$0xf]
    %v2208 = vld [vmem:[%s7 + $0x428] sm:$0xff]
    %v2209 = vld [vmem:[%s7 + $0x430] sm:$0xff]
    %v2210 = vld [vmem:[%s7 + $0x438] sm:$0xff]
    %v2211 = vld [vmem:[%s7 + $0x440] sm:$0xf]
    %v2212 = vld [vmem:[%s7 + $0x444] sm:$0xff]
    %v2213 = vld [vmem:[%s7 + $0x44c] sm:$0xff]
    %v2214 = vld [vmem:[%s7 + $0x454] sm:$0xff]
    %v2215 = vld [vmem:[%s7 + $0x45c] sm:$0xf]
    %v2216 = vld [vmem:[%s7 + $0x460] sm:$0xff]
    %v2217 = vld [vmem:[%s7 + $0x468] sm:$0xff]
    %v2218 = vld [vmem:[%s7 + $0x470] sm:$0xff]
    %v2219 = vld [vmem:[%s7 + $0x478] sm:$0xf]
    %v2220 = vld [vmem:[%s7 + $0x47c] sm:$0xff]
    %v2221 = vld [vmem:[%s7 + $0x484] sm:$0xff]
    %v2222 = vld [vmem:[%s7 + $0x48c] sm:$0xff]
    %v2223 = vld [vmem:[%s7 + $0x494] sm:$0xf]
    %v2224 = vld [vmem:[%s7 + $0x498] sm:$0xff]
    %v2225 = vld [vmem:[%s7 + $0x4a0] sm:$0xff]
    %v2226 = vld [vmem:[%s7 + $0x4a8] sm:$0xff]
    %v2227 = vld [vmem:[%s7 + $0x4b0] sm:$0xf]
    %v2228 = vld [vmem:[%s7 + $0x4b4] sm:$0xff]
    %v2229 = vld [vmem:[%s7 + $0x4bc] sm:$0xff]
    %v2230 = vld [vmem:[%s7 + $0x4c4] sm:$0xff]
    %v2231 = vld [vmem:[%s7 + $0x4cc] sm:$0xf]
    %v2232 = vld [vmem:[%s7 + $0x4d0] sm:$0xff]
    %v2233 = vld [vmem:[%s7 + $0x4d8] sm:$0xff]
    %v2234 = vld [vmem:[%s7 + $0x4e0] sm:$0xff]
    %v2235 = vld [vmem:[%s7 + $0x4e8] sm:$0xf]
    %v2236 = vld [vmem:[%s7 + $0x4ec] sm:$0xff]
    %v2237 = vld [vmem:[%s7 + $0x4f4] sm:$0xff]
    %v2238 = vld [vmem:[%s7 + $0x4fc] sm:$0xff]
    %v2239 = vld [vmem:[%s7 + $0x504] sm:$0xf]
    %v2240 = vld [vmem:[%s7 + $0x508] sm:$0xff]
    %v2241 = vld [vmem:[%s7 + $0x510] sm:$0xff]
    %v2242 = vld [vmem:[%s7 + $0x518] sm:$0xff]
    %v2243 = vld [vmem:[%s7 + $0x520] sm:$0xf]
    %v2244 = vld [vmem:[%s7 + $0x524] sm:$0xff]
    %v2245 = vld [vmem:[%s7 + $0x52c] sm:$0xff]
    %v2246 = vld [vmem:[%s7 + $0x534] sm:$0xff]
    %v2247 = vld [vmem:[%s7 + $0x53c] sm:$0xf]
    %v2248 = vld [vmem:[%s7 + $0x540] sm:$0xff]
    %v2249 = vld [vmem:[%s7 + $0x548] sm:$0xff]
    %v2250 = vld [vmem:[%s7 + $0x550] sm:$0xff]
    %v2251 = vld [vmem:[%s7 + $0x558] sm:$0xf]
    %v2252 = vld [vmem:[%s8] sm:$0x7f]
    %v2254 = vlaneseq
    %v2255 = vshrl.u32 %v2254, 7
    %v2256 = vsub.s32 0, %v2255
    %v2257 = vrot.slane %v2252, %v2256
    %v2258 = vlaneseq
    %v2259 = vshrl.u32 %v2258, 7
    %v2260 = vsub.s32 1, %v2259
    %v2261 = vrot.slane %v2252, %v2260
    %v2262 = vlaneseq
    %v2263 = vshrl.u32 %v2262, 7
    %v2264 = vsub.s32 2, %v2263
    %v2265 = vrot.slane %v2252, %v2264
    %v2266 = vlaneseq
    %v2267 = vshrl.u32 %v2266, 7
    %v2268 = vsub.s32 3, %v2267
    %v2269 = vrot.slane %v2252, %v2268
    %v2270 = vlaneseq
    %v2271 = vshrl.u32 %v2270, 7
    %v2272 = vsub.s32 4, %v2271
    %v2273 = vrot.slane %v2252, %v2272
    %v2274 = vlaneseq
    %v2275 = vshrl.u32 %v2274, 7
    %v2276 = vsub.s32 5, %v2275
    %v2277 = vrot.slane %v2252, %v2276
    %v2278 = vlaneseq
    %v2279 = vshrl.u32 %v2278, 7
    %v2280 = vsub.s32 6, %v2279
    %v2281 = vrot.slane %v2252, %v2280
    %v2485 = vunpack.c.l.b16 %v2056
    %v2486 = vunpack.c.h.b16 %v2056
    %v2487 = vunpack.c.l.b16 %v2057
    %v2488 = vunpack.c.h.b16 %v2057
    %v2489 = vunpack.c.l.b16 %v2058
    %v2490 = vunpack.c.h.b16 %v2058
    %v2491 = vunpack.c.l.b16 %v2059
    %v2492 = vunpack.c.l.b16 %v2060
    %v2493 = vunpack.c.h.b16 %v2060
    %v2494 = vunpack.c.l.b16 %v2061
    %v2495 = vunpack.c.h.b16 %v2061
    %v2496 = vunpack.c.l.b16 %v2062
    %v2497 = vunpack.c.h.b16 %v2062
    %v2498 = vunpack.c.l.b16 %v2063
    %v2499 = vunpack.c.l.b16 %v2064
    %v2500 = vunpack.c.h.b16 %v2064
    %v2501 = vunpack.c.l.b16 %v2065
    %v2502 = vunpack.c.h.b16 %v2065
    %v2503 = vunpack.c.l.b16 %v2066
    %v2504 = vunpack.c.h.b16 %v2066
    %v2505 = vunpack.c.l.b16 %v2067
    %v2506 = vunpack.c.l.b16 %v2068
    %v2507 = vunpack.c.h.b16 %v2068
    %v2508 = vunpack.c.l.b16 %v2069
    %v2509 = vunpack.c.h.b16 %v2069
    %v2510 = vunpack.c.l.b16 %v2070
    %v2511 = vunpack.c.h.b16 %v2070
    %v2512 = vunpack.c.l.b16 %v2071
    %v2513 = vunpack.c.l.b16 %v2072
    %v2514 = vunpack.c.h.b16 %v2072
    %v2515 = vunpack.c.l.b16 %v2073
    %v2516 = vunpack.c.h.b16 %v2073
    %v2517 = vunpack.c.l.b16 %v2074
    %v2518 = vunpack.c.h.b16 %v2074
    %v2519 = vunpack.c.l.b16 %v2075
    %v2520 = vunpack.c.l.b16 %v2076
    %v2521 = vunpack.c.h.b16 %v2076
    %v2522 = vunpack.c.l.b16 %v2077
    %v2523 = vunpack.c.h.b16 %v2077
    %v2524 = vunpack.c.l.b16 %v2078
    %v2525 = vunpack.c.h.b16 %v2078
    %v2526 = vunpack.c.l.b16 %v2079
    %v2527 = vunpack.c.l.b16 %v2080
    %v2528 = vunpack.c.h.b16 %v2080
    %v2529 = vunpack.c.l.b16 %v2081
    %v2530 = vunpack.c.h.b16 %v2081
    %v2531 = vunpack.c.l.b16 %v2082
    %v2532 = vunpack.c.h.b16 %v2082
    %v2533 = vunpack.c.l.b16 %v2083
    %v2534 = vunpack.c.l.b16 %v2084
    %v2535 = vunpack.c.h.b16 %v2084
    %v2536 = vunpack.c.l.b16 %v2085
    %v2537 = vunpack.c.h.b16 %v2085
    %v2538 = vunpack.c.l.b16 %v2086
    %v2539 = vunpack.c.h.b16 %v2086
    %v2540 = vunpack.c.l.b16 %v2087
    %v2541 = vunpack.c.l.b16 %v2088
    %v2542 = vunpack.c.h.b16 %v2088
    %v2543 = vunpack.c.l.b16 %v2089
    %v2544 = vunpack.c.h.b16 %v2089
    %v2545 = vunpack.c.l.b16 %v2090
    %v2546 = vunpack.c.h.b16 %v2090
    %v2547 = vunpack.c.l.b16 %v2091
    %v2548 = vunpack.c.l.b16 %v2092
    %v2549 = vunpack.c.h.b16 %v2092
    %v2550 = vunpack.c.l.b16 %v2093
    %v2551 = vunpack.c.h.b16 %v2093
    %v2552 = vunpack.c.l.b16 %v2094
    %v2553 = vunpack.c.h.b16 %v2094
    %v2554 = vunpack.c.l.b16 %v2095
    %v2555 = vunpack.c.l.b16 %v2096
    %v2556 = vunpack.c.h.b16 %v2096
    %v2557 = vunpack.c.l.b16 %v2097
    %v2558 = vunpack.c.h.b16 %v2097
    %v2559 = vunpack.c.l.b16 %v2098
    %v2560 = vunpack.c.h.b16 %v2098
    %v2561 = vunpack.c.l.b16 %v2099
    %v2562 = vunpack.c.l.b16 %v2100
    %v2563 = vunpack.c.h.b16 %v2100
    %v2564 = vunpack.c.l.b16 %v2101
    %v2565 = vunpack.c.h.b16 %v2101
    %v2566 = vunpack.c.l.b16 %v2102
    %v2567 = vunpack.c.h.b16 %v2102
    %v2568 = vunpack.c.l.b16 %v2103
    %v2569 = vunpack.c.l.b16 %v2104
    %v2570 = vunpack.c.h.b16 %v2104
    %v2571 = vunpack.c.l.b16 %v2105
    %v2572 = vunpack.c.h.b16 %v2105
    %v2573 = vunpack.c.l.b16 %v2106
    %v2574 = vunpack.c.h.b16 %v2106
    %v2575 = vunpack.c.l.b16 %v2107
    %v2576 = vunpack.c.l.b16 %v2108
    %v2577 = vunpack.c.h.b16 %v2108
    %v2578 = vunpack.c.l.b16 %v2109
    %v2579 = vunpack.c.h.b16 %v2109
    %v2580 = vunpack.c.l.b16 %v2110
    %v2581 = vunpack.c.h.b16 %v2110
    %v2582 = vunpack.c.l.b16 %v2111
    %v2583 = vunpack.c.l.b16 %v2112
    %v2584 = vunpack.c.h.b16 %v2112
    %v2585 = vunpack.c.l.b16 %v2113
    %v2586 = vunpack.c.h.b16 %v2113
    %v2587 = vunpack.c.l.b16 %v2114
    %v2588 = vunpack.c.h.b16 %v2114
    %v2589 = vunpack.c.l.b16 %v2115
    %v2590 = vunpack.c.l.b16 %v2116
    %v2591 = vunpack.c.h.b16 %v2116
    %v2592 = vunpack.c.l.b16 %v2117
    %v2593 = vunpack.c.h.b16 %v2117
    %v2594 = vunpack.c.l.b16 %v2118
    %v2595 = vunpack.c.h.b16 %v2118
    %v2596 = vunpack.c.l.b16 %v2119
    %v2597 = vunpack.c.l.b16 %v2120
    %v2598 = vunpack.c.h.b16 %v2120
    %v2599 = vunpack.c.l.b16 %v2121
    %v2600 = vunpack.c.h.b16 %v2121
    %v2601 = vunpack.c.l.b16 %v2122
    %v2602 = vunpack.c.h.b16 %v2122
    %v2603 = vunpack.c.l.b16 %v2123
    %v2604 = vunpack.c.l.b16 %v2124
    %v2605 = vunpack.c.h.b16 %v2124
    %v2606 = vunpack.c.l.b16 %v2125
    %v2607 = vunpack.c.h.b16 %v2125
    %v2608 = vunpack.c.l.b16 %v2126
    %v2609 = vunpack.c.h.b16 %v2126
    %v2610 = vunpack.c.l.b16 %v2127
    %v2611 = vunpack.c.l.b16 %v2128
    %v2612 = vunpack.c.h.b16 %v2128
    %v2613 = vunpack.c.l.b16 %v2129
    %v2614 = vunpack.c.h.b16 %v2129
    %v2615 = vunpack.c.l.b16 %v2130
    %v2616 = vunpack.c.h.b16 %v2130
    %v2617 = vunpack.c.l.b16 %v2131
    %v2618 = vunpack.c.l.b16 %v2132
    %v2619 = vunpack.c.h.b16 %v2132
    %v2620 = vunpack.c.l.b16 %v2133
    %v2621 = vunpack.c.h.b16 %v2133
    %v2622 = vunpack.c.l.b16 %v2134
    %v2623 = vunpack.c.h.b16 %v2134
    %v2624 = vunpack.c.l.b16 %v2135
    %v2625 = vunpack.c.l.b16 %v2136
    %v2626 = vunpack.c.h.b16 %v2136
    %v2627 = vunpack.c.l.b16 %v2137
    %v2628 = vunpack.c.h.b16 %v2137
    %v2629 = vunpack.c.l.b16 %v2138
    %v2630 = vunpack.c.h.b16 %v2138
    %v2631 = vunpack.c.l.b16 %v2139
    %v2632 = vunpack.c.l.b16 %v2140
    %v2633 = vunpack.c.h.b16 %v2140
    %v2634 = vunpack.c.l.b16 %v2141
    %v2635 = vunpack.c.h.b16 %v2141
    %v2636 = vunpack.c.l.b16 %v2142
    %v2637 = vunpack.c.h.b16 %v2142
    %v2638 = vunpack.c.l.b16 %v2143
    %v2639 = vunpack.c.l.b16 %v2144
    %v2640 = vunpack.c.h.b16 %v2144
    %v2641 = vunpack.c.l.b16 %v2145
    %v2642 = vunpack.c.h.b16 %v2145
    %v2643 = vunpack.c.l.b16 %v2146
    %v2644 = vunpack.c.h.b16 %v2146
    %v2645 = vunpack.c.l.b16 %v2147
    %v2646 = vunpack.c.l.b16 %v2148
    %v2647 = vunpack.c.h.b16 %v2148
    %v2648 = vunpack.c.l.b16 %v2149
    %v2649 = vunpack.c.h.b16 %v2149
    %v2650 = vunpack.c.l.b16 %v2150
    %v2651 = vunpack.c.h.b16 %v2150
    %v2652 = vunpack.c.l.b16 %v2151
    %v2653 = vunpack.c.l.b16 %v2152
    %v2654 = vunpack.c.h.b16 %v2152
    %v2655 = vunpack.c.l.b16 %v2153
    %v2656 = vunpack.c.h.b16 %v2153
    %v2657 = vunpack.c.l.b16 %v2154
    %v2658 = vunpack.c.h.b16 %v2154
    %v2659 = vunpack.c.l.b16 %v2155
    %v2660 = vunpack.c.l.b16 %v2156
    %v2661 = vunpack.c.h.b16 %v2156
    %v2662 = vunpack.c.l.b16 %v2157
    %v2663 = vunpack.c.h.b16 %v2157
    %v2664 = vunpack.c.l.b16 %v2158
    %v2665 = vunpack.c.h.b16 %v2158
    %v2666 = vunpack.c.l.b16 %v2159
    %v2667 = vunpack.c.l.b16 %v2160
    %v2668 = vunpack.c.h.b16 %v2160
    %v2669 = vunpack.c.l.b16 %v2161
    %v2670 = vunpack.c.h.b16 %v2161
    %v2671 = vunpack.c.l.b16 %v2162
    %v2672 = vunpack.c.h.b16 %v2162
    %v2673 = vunpack.c.l.b16 %v2163
    %v2674 = vunpack.c.l.b16 %v2164
    %v2675 = vunpack.c.h.b16 %v2164
    %v2676 = vunpack.c.l.b16 %v2165
    %v2677 = vunpack.c.h.b16 %v2165
    %v2678 = vunpack.c.l.b16 %v2166
    %v2679 = vunpack.c.h.b16 %v2166
    %v2680 = vunpack.c.l.b16 %v2167
    %v2681 = vunpack.c.l.b16 %v2168
    %v2682 = vunpack.c.h.b16 %v2168
    %v2683 = vunpack.c.l.b16 %v2169
    %v2684 = vunpack.c.h.b16 %v2169
    %v2685 = vunpack.c.l.b16 %v2170
    %v2686 = vunpack.c.h.b16 %v2170
    %v2687 = vunpack.c.l.b16 %v2171
    %v2688 = vunpack.c.l.b16 %v2172
    %v2689 = vunpack.c.h.b16 %v2172
    %v2690 = vunpack.c.l.b16 %v2173
    %v2691 = vunpack.c.h.b16 %v2173
    %v2692 = vunpack.c.l.b16 %v2174
    %v2693 = vunpack.c.h.b16 %v2174
    %v2694 = vunpack.c.l.b16 %v2175
    %v2695 = vunpack.c.l.b16 %v2176
    %v2696 = vunpack.c.h.b16 %v2176
    %v2697 = vunpack.c.l.b16 %v2177
    %v2698 = vunpack.c.h.b16 %v2177
    %v2699 = vunpack.c.l.b16 %v2178
    %v2700 = vunpack.c.h.b16 %v2178
    %v2701 = vunpack.c.l.b16 %v2179
    %v2702 = vunpack.c.l.b16 %v2180
    %v2703 = vunpack.c.h.b16 %v2180
    %v2704 = vunpack.c.l.b16 %v2181
    %v2705 = vunpack.c.h.b16 %v2181
    %v2706 = vunpack.c.l.b16 %v2182
    %v2707 = vunpack.c.h.b16 %v2182
    %v2708 = vunpack.c.l.b16 %v2183
    %v2709 = vunpack.c.l.b16 %v2184
    %v2710 = vunpack.c.h.b16 %v2184
    %v2711 = vunpack.c.l.b16 %v2185
    %v2712 = vunpack.c.h.b16 %v2185
    %v2713 = vunpack.c.l.b16 %v2186
    %v2714 = vunpack.c.h.b16 %v2186
    %v2715 = vunpack.c.l.b16 %v2187
    %v2716 = vunpack.c.l.b16 %v2188
    %v2717 = vunpack.c.h.b16 %v2188
    %v2718 = vunpack.c.l.b16 %v2189
    %v2719 = vunpack.c.h.b16 %v2189
    %v2720 = vunpack.c.l.b16 %v2190
    %v2721 = vunpack.c.h.b16 %v2190
    %v2722 = vunpack.c.l.b16 %v2191
    %v2723 = vunpack.c.l.b16 %v2192
    %v2724 = vunpack.c.h.b16 %v2192
    %v2725 = vunpack.c.l.b16 %v2193
    %v2726 = vunpack.c.h.b16 %v2193
    %v2727 = vunpack.c.l.b16 %v2194
    %v2728 = vunpack.c.h.b16 %v2194
    %v2729 = vunpack.c.l.b16 %v2195
    %v2730 = vunpack.c.l.b16 %v2196
    %v2731 = vunpack.c.h.b16 %v2196
    %v2732 = vunpack.c.l.b16 %v2197
    %v2733 = vunpack.c.h.b16 %v2197
    %v2734 = vunpack.c.l.b16 %v2198
    %v2735 = vunpack.c.h.b16 %v2198
    %v2736 = vunpack.c.l.b16 %v2199
    %v2737 = vunpack.c.l.b16 %v2200
    %v2738 = vunpack.c.h.b16 %v2200
    %v2739 = vunpack.c.l.b16 %v2201
    %v2740 = vunpack.c.h.b16 %v2201
    %v2741 = vunpack.c.l.b16 %v2202
    %v2742 = vunpack.c.h.b16 %v2202
    %v2743 = vunpack.c.l.b16 %v2203
    %v2744 = vunpack.c.l.b16 %v2204
    %v2745 = vunpack.c.h.b16 %v2204
    %v2746 = vunpack.c.l.b16 %v2205
    %v2747 = vunpack.c.h.b16 %v2205
    %v2748 = vunpack.c.l.b16 %v2206
    %v2749 = vunpack.c.h.b16 %v2206
    %v2750 = vunpack.c.l.b16 %v2207
    %v2751 = vunpack.c.l.b16 %v2208
    %v2752 = vunpack.c.h.b16 %v2208
    %v2753 = vunpack.c.l.b16 %v2209
    %v2754 = vunpack.c.h.b16 %v2209
    %v2755 = vunpack.c.l.b16 %v2210
    %v2756 = vunpack.c.h.b16 %v2210
    %v2757 = vunpack.c.l.b16 %v2211
    %v2758 = vunpack.c.l.b16 %v2212
    %v2759 = vunpack.c.h.b16 %v2212
    %v2760 = vunpack.c.l.b16 %v2213
    %v2761 = vunpack.c.h.b16 %v2213
    %v2762 = vunpack.c.l.b16 %v2214
    %v2763 = vunpack.c.h.b16 %v2214
    %v2764 = vunpack.c.l.b16 %v2215
    %v2765 = vunpack.c.l.b16 %v2216
    %v2766 = vunpack.c.h.b16 %v2216
    %v2767 = vunpack.c.l.b16 %v2217
    %v2768 = vunpack.c.h.b16 %v2217
    %v2769 = vunpack.c.l.b16 %v2218
    %v2770 = vunpack.c.h.b16 %v2218
    %v2771 = vunpack.c.l.b16 %v2219
    %v2772 = vunpack.c.l.b16 %v2220
    %v2773 = vunpack.c.h.b16 %v2220
    %v2774 = vunpack.c.l.b16 %v2221
    %v2775 = vunpack.c.h.b16 %v2221
    %v2776 = vunpack.c.l.b16 %v2222
    %v2777 = vunpack.c.h.b16 %v2222
    %v2778 = vunpack.c.l.b16 %v2223
    %v2779 = vunpack.c.l.b16 %v2224
    %v2780 = vunpack.c.h.b16 %v2224
    %v2781 = vunpack.c.l.b16 %v2225
    %v2782 = vunpack.c.h.b16 %v2225
    %v2783 = vunpack.c.l.b16 %v2226
    %v2784 = vunpack.c.h.b16 %v2226
    %v2785 = vunpack.c.l.b16 %v2227
    %v2786 = vunpack.c.l.b16 %v2228
    %v2787 = vunpack.c.h.b16 %v2228
    %v2788 = vunpack.c.l.b16 %v2229
    %v2789 = vunpack.c.h.b16 %v2229
    %v2790 = vunpack.c.l.b16 %v2230
    %v2791 = vunpack.c.h.b16 %v2230
    %v2792 = vunpack.c.l.b16 %v2231
    %v2793 = vunpack.c.l.b16 %v2232
    %v2794 = vunpack.c.h.b16 %v2232
    %v2795 = vunpack.c.l.b16 %v2233
    %v2796 = vunpack.c.h.b16 %v2233
    %v2797 = vunpack.c.l.b16 %v2234
    %v2798 = vunpack.c.h.b16 %v2234
    %v2799 = vunpack.c.l.b16 %v2235
    %v2800 = vunpack.c.l.b16 %v2236
    %v2801 = vunpack.c.h.b16 %v2236
    %v2802 = vunpack.c.l.b16 %v2237
    %v2803 = vunpack.c.h.b16 %v2237
    %v2804 = vunpack.c.l.b16 %v2238
    %v2805 = vunpack.c.h.b16 %v2238
    %v2806 = vunpack.c.l.b16 %v2239
    %v2807 = vunpack.c.l.b16 %v2240
    %v2808 = vunpack.c.h.b16 %v2240
    %v2809 = vunpack.c.l.b16 %v2241
    %v2810 = vunpack.c.h.b16 %v2241
    %v2811 = vunpack.c.l.b16 %v2242
    %v2812 = vunpack.c.h.b16 %v2242
    %v2813 = vunpack.c.l.b16 %v2243
    %v2814 = vunpack.c.l.b16 %v2244
    %v2815 = vunpack.c.h.b16 %v2244
    %v2816 = vunpack.c.l.b16 %v2245
    %v2817 = vunpack.c.h.b16 %v2245
    %v2818 = vunpack.c.l.b16 %v2246
    %v2819 = vunpack.c.h.b16 %v2246
    %v2820 = vunpack.c.l.b16 %v2247
    %v2821 = vunpack.c.l.b16 %v2248
    %v2822 = vunpack.c.h.b16 %v2248
    %v2823 = vunpack.c.l.b16 %v2249
    %v2824 = vunpack.c.h.b16 %v2249
    %v2825 = vunpack.c.l.b16 %v2250
    %v2826 = vunpack.c.h.b16 %v2250
    %v2827 = vunpack.c.l.b16 %v2251
    %v2828 = vpack.c.b16 %v2492, %v2485
    %v2829 = vpack.c.b16 %v2493, %v2486
    %v2830 = vpack.c.b16 %v2494, %v2487
    %v2831 = vpack.c.b16 %v2495, %v2488
    %v2832 = vpack.c.b16 %v2496, %v2489
    %v2833 = vpack.c.b16 %v2497, %v2490
    %v2834 = vpack.c.b16 %v2498, %v2491
    %v2835 = vpack.c.b16 %v2506, %v2499
    %v2836 = vpack.c.b16 %v2507, %v2500
    %v2837 = vpack.c.b16 %v2508, %v2501
    %v2838 = vpack.c.b16 %v2509, %v2502
    %v2839 = vpack.c.b16 %v2510, %v2503
    %v2840 = vpack.c.b16 %v2511, %v2504
    %v2841 = vpack.c.b16 %v2512, %v2505
    %v2842 = vpack.c.b16 %v2520, %v2513
    %v2843 = vpack.c.b16 %v2521, %v2514
    %v2844 = vpack.c.b16 %v2522, %v2515
    %v2845 = vpack.c.b16 %v2523, %v2516
    %v2846 = vpack.c.b16 %v2524, %v2517
    %v2847 = vpack.c.b16 %v2525, %v2518
    %v2848 = vpack.c.b16 %v2526, %v2519
    %v2849 = vpack.c.b16 %v2534, %v2527
    %v2850 = vpack.c.b16 %v2535, %v2528
    %v2851 = vpack.c.b16 %v2536, %v2529
    %v2852 = vpack.c.b16 %v2537, %v2530
    %v2853 = vpack.c.b16 %v2538, %v2531
    %v2854 = vpack.c.b16 %v2539, %v2532
    %v2855 = vpack.c.b16 %v2540, %v2533
    %v2856 = vpack.c.b16 %v2548, %v2541
    %v2857 = vpack.c.b16 %v2549, %v2542
    %v2858 = vpack.c.b16 %v2550, %v2543
    %v2859 = vpack.c.b16 %v2551, %v2544
    %v2860 = vpack.c.b16 %v2552, %v2545
    %v2861 = vpack.c.b16 %v2553, %v2546
    %v2862 = vpack.c.b16 %v2554, %v2547
    %v2863 = vpack.c.b16 %v2562, %v2555
    %v2864 = vpack.c.b16 %v2563, %v2556
    %v2865 = vpack.c.b16 %v2564, %v2557
    %v2866 = vpack.c.b16 %v2565, %v2558
    %v2867 = vpack.c.b16 %v2566, %v2559
    %v2868 = vpack.c.b16 %v2567, %v2560
    %v2869 = vpack.c.b16 %v2568, %v2561
    %v2870 = vpack.c.b16 %v2576, %v2569
    %v2871 = vpack.c.b16 %v2577, %v2570
    %v2872 = vpack.c.b16 %v2578, %v2571
    %v2873 = vpack.c.b16 %v2579, %v2572
    %v2874 = vpack.c.b16 %v2580, %v2573
    %v2875 = vpack.c.b16 %v2581, %v2574
    %v2876 = vpack.c.b16 %v2582, %v2575
    %v2877 = vpack.c.b16 %v2590, %v2583
    %v2878 = vpack.c.b16 %v2591, %v2584
    %v2879 = vpack.c.b16 %v2592, %v2585
    %v2880 = vpack.c.b16 %v2593, %v2586
    %v2881 = vpack.c.b16 %v2594, %v2587
    %v2882 = vpack.c.b16 %v2595, %v2588
    %v2883 = vpack.c.b16 %v2596, %v2589
    %v2884 = vpack.c.b16 %v2604, %v2597
    %v2885 = vpack.c.b16 %v2605, %v2598
    %v2886 = vpack.c.b16 %v2606, %v2599
    %v2887 = vpack.c.b16 %v2607, %v2600
    %v2888 = vpack.c.b16 %v2608, %v2601
    %v2889 = vpack.c.b16 %v2609, %v2602
    %v2890 = vpack.c.b16 %v2610, %v2603
    %v2891 = vpack.c.b16 %v2618, %v2611
    %v2892 = vpack.c.b16 %v2619, %v2612
    %v2893 = vpack.c.b16 %v2620, %v2613
    %v2894 = vpack.c.b16 %v2621, %v2614
    %v2895 = vpack.c.b16 %v2622, %v2615
    %v2896 = vpack.c.b16 %v2623, %v2616
    %v2897 = vpack.c.b16 %v2624, %v2617
    %v2898 = vpack.c.b16 %v2632, %v2625
    %v2899 = vpack.c.b16 %v2633, %v2626
    %v2900 = vpack.c.b16 %v2634, %v2627
    %v2901 = vpack.c.b16 %v2635, %v2628
    %v2902 = vpack.c.b16 %v2636, %v2629
    %v2903 = vpack.c.b16 %v2637, %v2630
    %v2904 = vpack.c.b16 %v2638, %v2631
    %v2905 = vpack.c.b16 %v2646, %v2639
    %v2906 = vpack.c.b16 %v2647, %v2640
    %v2907 = vpack.c.b16 %v2648, %v2641
    %v2908 = vpack.c.b16 %v2649, %v2642
    %v2909 = vpack.c.b16 %v2650, %v2643
    %v2910 = vpack.c.b16 %v2651, %v2644
    %v2911 = vpack.c.b16 %v2652, %v2645
    %v2912 = vpack.c.b16 %v2660, %v2653
    %v2913 = vpack.c.b16 %v2661, %v2654
    %v2914 = vpack.c.b16 %v2662, %v2655
    %v2915 = vpack.c.b16 %v2663, %v2656
    %v2916 = vpack.c.b16 %v2664, %v2657
    %v2917 = vpack.c.b16 %v2665, %v2658
    %v2918 = vpack.c.b16 %v2666, %v2659
    %v2919 = vpack.c.b16 %v2674, %v2667
    %v2920 = vpack.c.b16 %v2675, %v2668
    %v2921 = vpack.c.b16 %v2676, %v2669
    %v2922 = vpack.c.b16 %v2677, %v2670
    %v2923 = vpack.c.b16 %v2678, %v2671
    %v2924 = vpack.c.b16 %v2679, %v2672
    %v2925 = vpack.c.b16 %v2680, %v2673
    %v2926 = vpack.c.b16 %v2688, %v2681
    %v2927 = vpack.c.b16 %v2689, %v2682
    %v2928 = vpack.c.b16 %v2690, %v2683
    %v2929 = vpack.c.b16 %v2691, %v2684
    %v2930 = vpack.c.b16 %v2692, %v2685
    %v2931 = vpack.c.b16 %v2693, %v2686
    %v2932 = vpack.c.b16 %v2694, %v2687
    %v2933 = vpack.c.b16 %v2702, %v2695
    %v2934 = vpack.c.b16 %v2703, %v2696
    %v2935 = vpack.c.b16 %v2704, %v2697
    %v2936 = vpack.c.b16 %v2705, %v2698
    %v2937 = vpack.c.b16 %v2706, %v2699
    %v2938 = vpack.c.b16 %v2707, %v2700
    %v2939 = vpack.c.b16 %v2708, %v2701
    %v2940 = vpack.c.b16 %v2716, %v2709
    %v2941 = vpack.c.b16 %v2717, %v2710
    %v2942 = vpack.c.b16 %v2718, %v2711
    %v2943 = vpack.c.b16 %v2719, %v2712
    %v2944 = vpack.c.b16 %v2720, %v2713
    %v2945 = vpack.c.b16 %v2721, %v2714
    %v2946 = vpack.c.b16 %v2722, %v2715
    %v2947 = vpack.c.b16 %v2730, %v2723
    %v2948 = vpack.c.b16 %v2731, %v2724
    %v2949 = vpack.c.b16 %v2732, %v2725
    %v2950 = vpack.c.b16 %v2733, %v2726
    %v2951 = vpack.c.b16 %v2734, %v2727
    %v2952 = vpack.c.b16 %v2735, %v2728
    %v2953 = vpack.c.b16 %v2736, %v2729
    %v2954 = vpack.c.b16 %v2744, %v2737
    %v2955 = vpack.c.b16 %v2745, %v2738
    %v2956 = vpack.c.b16 %v2746, %v2739
    %v2957 = vpack.c.b16 %v2747, %v2740
    %v2958 = vpack.c.b16 %v2748, %v2741
    %v2959 = vpack.c.b16 %v2749, %v2742
    %v2960 = vpack.c.b16 %v2750, %v2743
    %v2961 = vpack.c.b16 %v2758, %v2751
    %v2962 = vpack.c.b16 %v2759, %v2752
    %v2963 = vpack.c.b16 %v2760, %v2753
    %v2964 = vpack.c.b16 %v2761, %v2754
    %v2965 = vpack.c.b16 %v2762, %v2755
    %v2966 = vpack.c.b16 %v2763, %v2756
    %v2967 = vpack.c.b16 %v2764, %v2757
    %v2968 = vpack.c.b16 %v2772, %v2765
    %v2969 = vpack.c.b16 %v2773, %v2766
    %v2970 = vpack.c.b16 %v2774, %v2767
    %v2971 = vpack.c.b16 %v2775, %v2768
    %v2972 = vpack.c.b16 %v2776, %v2769
    %v2973 = vpack.c.b16 %v2777, %v2770
    %v2974 = vpack.c.b16 %v2778, %v2771
    %v2975 = vpack.c.b16 %v2786, %v2779
    %v2976 = vpack.c.b16 %v2787, %v2780
    %v2977 = vpack.c.b16 %v2788, %v2781
    %v2978 = vpack.c.b16 %v2789, %v2782
    %v2979 = vpack.c.b16 %v2790, %v2783
    %v2980 = vpack.c.b16 %v2791, %v2784
    %v2981 = vpack.c.b16 %v2792, %v2785
    %v2982 = vpack.c.b16 %v2800, %v2793
    %v2983 = vpack.c.b16 %v2801, %v2794
    %v2984 = vpack.c.b16 %v2802, %v2795
    %v2985 = vpack.c.b16 %v2803, %v2796
    %v2986 = vpack.c.b16 %v2804, %v2797
    %v2987 = vpack.c.b16 %v2805, %v2798
    %v2988 = vpack.c.b16 %v2806, %v2799
    %v2989 = vpack.c.b16 %v2814, %v2807
    %v2990 = vpack.c.b16 %v2815, %v2808
    %v2991 = vpack.c.b16 %v2816, %v2809
    %v2992 = vpack.c.b16 %v2817, %v2810
    %v2993 = vpack.c.b16 %v2818, %v2811
    %v2994 = vpack.c.b16 %v2819, %v2812
    %v2995 = vpack.c.b16 %v2820, %v2813
    %v2996 = vpack.c.b16 %v2821, %v2821
    %v2997 = vpack.c.b16 %v2822, %v2822
    %v2998 = vpack.c.b16 %v2823, %v2823
    %v2999 = vpack.c.b16 %v2824, %v2824
    %v3000 = vpack.c.b16 %v2825, %v2825
    %v3001 = vpack.c.b16 %v2826, %v2826
    %v3002 = vpack.c.b16 %v2827, %v2827
    %v3172 = vsel %vm1816, %v2055, 0
    %v3175 = vsel %vm1820, %v2996, 0
    %v3178 = vsel %vm1820, %v2997, 0
    %v3181 = vsel %vm1820, %v2998, 0
    %v3184 = vsel %vm1820, %v2999, 0
    %v3187 = vsel %vm1820, %v3000, 0
    %v3190 = vsel %vm1820, %v3001, 0
    %v3193 = vsel %vm1820, %v3002, 0
    %3195 = vmatprep.subr.bf16.mxu0 %v2878
    %3196 = vmatpush1.bf16.msra.mxu0 %v2877
    %3197 = vmatprep.subr.bf16.mxu0 %v2871
    %3198 = vmatpush1.bf16.msra.mxu0 %v2870
    %3199 = vmatprep.subr.bf16.mxu0 %v2864
    %3200 = vmatpush1.bf16.msra.mxu0 %v2863
    %3201 = vmatprep.subr.bf16.mxu0 %v2857
    %3202 = vmatpush1.bf16.msra.mxu0 %v2856
    %3203 = vmatprep.subr.bf16.mxu0 %v2850
    %3204 = vmatpush1.bf16.msra.mxu0 %v2849
    %3205 = vmatprep.subr.bf16.mxu0 %v2843
    %3206 = vmatpush1.bf16.msra.mxu0 %v2842
    %3207 = vmatprep.subr.bf16.mxu0 %v2836
    %3208 = vmatpush1.bf16.msra.mxu0 %v2835
    %3209 = vmatprep.subr.bf16.mxu0 %v2829
    %3210 = vmatpush1.bf16.msra.mxu0 %v2828
    %3211 = vmatprep.subr.bf16.mxu0 %v2934
    %3212 = vmatpush2.bf16.msra.mxu0 %v2933
    %3213 = vmatprep.subr.bf16.mxu0 %v2927
    %3214 = vmatpush2.bf16.msra.mxu0 %v2926
    %3215 = vmatprep.subr.bf16.mxu0 %v2920
    %3216 = vmatpush2.bf16.msra.mxu0 %v2919
    %3217 = vmatprep.subr.bf16.mxu0 %v2913
    %3218 = vmatpush2.bf16.msra.mxu0 %v2912
    %3219 = vmatprep.subr.bf16.mxu0 %v2906
    %3220 = vmatpush2.bf16.msra.mxu0 %v2905
    %3221 = vmatprep.subr.bf16.mxu0 %v2899
    %3222 = vmatpush2.bf16.msra.mxu0 %v2898
    %3223 = vmatprep.subr.bf16.mxu0 %v2892
    %3224 = vmatpush2.bf16.msra.mxu0 %v2891
    %3225 = vmatprep.subr.bf16.mxu0 %v2885
    %3226 = vmatpush2.bf16.msra.mxu0 %v2884
    %3227 = vmatprep.mubr.bf16.mxu0 %v2053
    %3228 = vmatmul.mubr.bf16.gmra.mxu0 %v2052
    %v3229 = vpop.f32.mrf.mxu0
    %v3230 = vadd.f32 %v2257, %v3229
    %v3231 = vpop.f32.mrf.mxu0
    %v3232 = vadd.f32 %v2261, %v3231
    %v3233 = vpop.f32.mrf.mxu0
    %v3234 = vadd.f32 %v2257, %v3233
    %v3235 = vpop.f32.mrf.mxu0
    %v3236 = vadd.f32 %v2261, %v3235
    %3237 = vdwg.mxu0
    %3238 = vmatprep.subr.bf16.mxu0 %v2990
    %3239 = vmatpush1.bf16.msra.mxu0 %v2989
    %3240 = vmatprep.subr.bf16.mxu0 %v2983
    %3241 = vmatpush1.bf16.msra.mxu0 %v2982
    %3242 = vmatprep.subr.bf16.mxu0 %v2976
    %3243 = vmatpush1.bf16.msra.mxu0 %v2975
    %3244 = vmatprep.subr.bf16.mxu0 %v2969
    %3245 = vmatpush1.bf16.msra.mxu0 %v2968
    %3246 = vmatprep.subr.bf16.mxu0 %v2962
    %3247 = vmatpush1.bf16.msra.mxu0 %v2961
    %3248 = vmatprep.subr.bf16.mxu0 %v2955
    %3249 = vmatpush1.bf16.msra.mxu0 %v2954
    %3250 = vmatprep.subr.bf16.mxu0 %v2948
    %3251 = vmatpush1.bf16.msra.mxu0 %v2947
    %3252 = vmatprep.subr.bf16.mxu0 %v2941
    %3253 = vmatpush1.bf16.msra.mxu0 %v2940
    %3254 = vmatprep.subr.bf16.mxu0 0
    %3255 = vmatpush2.bf16.msra.mxu0 0
    %3256 = vmatprep.subr.bf16.mxu0 0
    %3257 = vmatpush2.bf16.msra.mxu0 0
    %3258 = vmatprep.subr.bf16.mxu0 0
    %3259 = vmatpush2.bf16.msra.mxu0 0
    %3260 = vmatprep.subr.bf16.mxu0 0
    %3261 = vmatpush2.bf16.msra.mxu0 0
    %3262 = vmatprep.subr.bf16.mxu0 0
    %3263 = vmatpush2.bf16.msra.mxu0 0
    %3264 = vmatprep.subr.bf16.mxu0 0
    %3265 = vmatpush2.bf16.msra.mxu0 0
    %3266 = vmatprep.subr.bf16.mxu0 0
    %3267 = vmatpush2.bf16.msra.mxu0 0
    %3268 = vmatprep.subr.bf16.mxu0 %v3178
    %3269 = vmatpush2.bf16.msra.mxu0 %v3175
    %3270 = vmatprep.mubr.bf16.mxu0 %v3172
    %3271 = vmatmul.mubr.bf16.gmra.mxu0 %v2054
    %v3272 = vpop.f32.mrf.mxu0
    %v3273 = vadd.f32 %v3230, %v3272
    %v3274 = vpop.f32.mrf.mxu0
    %v3275 = vadd.f32 %v3232, %v3274
    %v3276 = vpop.f32.mrf.mxu0
    %v3277 = vadd.f32 %v3234, %v3276
    %v3278 = vpop.f32.mrf.mxu0
    %v3279 = vadd.f32 %v3236, %v3278
    %3280 = vdwg.mxu0
    %3281 = vmatprep.subr.bf16.mxu0 %v2880
    %3282 = vmatpush1.bf16.msra.mxu0 %v2879
    %3283 = vmatprep.subr.bf16.mxu0 %v2873
    %3284 = vmatpush1.bf16.msra.mxu0 %v2872
    %3285 = vmatprep.subr.bf16.mxu0 %v2866
    %3286 = vmatpush1.bf16.msra.mxu0 %v2865
    %3287 = vmatprep.subr.bf16.mxu0 %v2859
    %3288 = vmatpush1.bf16.msra.mxu0 %v2858
    %3289 = vmatprep.subr.bf16.mxu0 %v2852
    %3290 = vmatpush1.bf16.msra.mxu0 %v2851
    %3291 = vmatprep.subr.bf16.mxu0 %v2845
    %3292 = vmatpush1.bf16.msra.mxu0 %v2844
    %3293 = vmatprep.subr.bf16.mxu0 %v2838
    %3294 = vmatpush1.bf16.msra.mxu0 %v2837
    %3295 = vmatprep.subr.bf16.mxu0 %v2831
    %3296 = vmatpush1.bf16.msra.mxu0 %v2830
    %3297 = vmatprep.subr.bf16.mxu0 %v2936
    %3298 = vmatpush2.bf16.msra.mxu0 %v2935
    %3299 = vmatprep.subr.bf16.mxu0 %v2929
    %3300 = vmatpush2.bf16.msra.mxu0 %v2928
    %3301 = vmatprep.subr.bf16.mxu0 %v2922
    %3302 = vmatpush2.bf16.msra.mxu0 %v2921
    %3303 = vmatprep.subr.bf16.mxu0 %v2915
    %3304 = vmatpush2.bf16.msra.mxu0 %v2914
    %3305 = vmatprep.subr.bf16.mxu0 %v2908
    %3306 = vmatpush2.bf16.msra.mxu0 %v2907
    %3307 = vmatprep.subr.bf16.mxu0 %v2901
    %3308 = vmatpush2.bf16.msra.mxu0 %v2900
    %3309 = vmatprep.subr.bf16.mxu0 %v2894
    %3310 = vmatpush2.bf16.msra.mxu0 %v2893
    %3311 = vmatprep.subr.bf16.mxu0 %v2887
    %3312 = vmatpush2.bf16.msra.mxu0 %v2886
    %3313 = vmatprep.mubr.bf16.mxu0 %v2053
    %3314 = vmatmul.mubr.bf16.gmra.mxu0 %v2052
    %v3315 = vpop.f32.mrf.mxu0
    %v3316 = vadd.f32 %v2265, %v3315
    %v3317 = vpop.f32.mrf.mxu0
    %v3318 = vadd.f32 %v2269, %v3317
    %v3319 = vpop.f32.mrf.mxu0
    %v3320 = vadd.f32 %v2265, %v3319
    %v3321 = vpop.f32.mrf.mxu0
    %v3322 = vadd.f32 %v2269, %v3321
    %3323 = vdwg.mxu0
    %3324 = vmatprep.subr.bf16.mxu0 %v2992
    %3325 = vmatpush1.bf16.msra.mxu0 %v2991
    %3326 = vmatprep.subr.bf16.mxu0 %v2985
    %3327 = vmatpush1.bf16.msra.mxu0 %v2984
    %3328 = vmatprep.subr.bf16.mxu0 %v2978
    %3329 = vmatpush1.bf16.msra.mxu0 %v2977
    %3330 = vmatprep.subr.bf16.mxu0 %v2971
    %3331 = vmatpush1.bf16.msra.mxu0 %v2970
    %3332 = vmatprep.subr.bf16.mxu0 %v2964
    %3333 = vmatpush1.bf16.msra.mxu0 %v2963
    %3334 = vmatprep.subr.bf16.mxu0 %v2957
    %3335 = vmatpush1.bf16.msra.mxu0 %v2956
    %3336 = vmatprep.subr.bf16.mxu0 %v2950
    %3337 = vmatpush1.bf16.msra.mxu0 %v2949
    %3338 = vmatprep.subr.bf16.mxu0 %v2943
    %3339 = vmatpush1.bf16.msra.mxu0 %v2942
    %3340 = vmatprep.subr.bf16.mxu0 0
    %3341 = vmatpush2.bf16.msra.mxu0 0
    %3342 = vmatprep.subr.bf16.mxu0 0
    %3343 = vmatpush2.bf16.msra.mxu0 0
    %3344 = vmatprep.subr.bf16.mxu0 0
    %3345 = vmatpush2.bf16.msra.mxu0 0
    %3346 = vmatprep.subr.bf16.mxu0 0
    %3347 = vmatpush2.bf16.msra.mxu0 0
    %3348 = vmatprep.subr.bf16.mxu0 0
    %3349 = vmatpush2.bf16.msra.mxu0 0
    %3350 = vmatprep.subr.bf16.mxu0 0
    %3351 = vmatpush2.bf16.msra.mxu0 0
    %3352 = vmatprep.subr.bf16.mxu0 0
    %3353 = vmatpush2.bf16.msra.mxu0 0
    %3354 = vmatprep.subr.bf16.mxu0 %v3184
    %3355 = vmatpush2.bf16.msra.mxu0 %v3181
    %3356 = vmatprep.mubr.bf16.mxu0 %v3172
    %3357 = vmatmul.mubr.bf16.gmra.mxu0 %v2054
    %v3358 = vpop.f32.mrf.mxu0
    %v3359 = vadd.f32 %v3316, %v3358
    %v3360 = vpop.f32.mrf.mxu0
    %v3361 = vadd.f32 %v3318, %v3360
    %v3362 = vpop.f32.mrf.mxu0
    %v3363 = vadd.f32 %v3320, %v3362
    %v3364 = vpop.f32.mrf.mxu0
    %v3365 = vadd.f32 %v3322, %v3364
    %3366 = vdwg.mxu0
    %3367 = vmatprep.subr.bf16.mxu0 %v2882
    %3368 = vmatpush1.bf16.msra.mxu0 %v2881
    %3369 = vmatprep.subr.bf16.mxu0 %v2875
    %3370 = vmatpush1.bf16.msra.mxu0 %v2874
    %3371 = vmatprep.subr.bf16.mxu0 %v2868
    %3372 = vmatpush1.bf16.msra.mxu0 %v2867
    %3373 = vmatprep.subr.bf16.mxu0 %v2861
    %3374 = vmatpush1.bf16.msra.mxu0 %v2860
    %3375 = vmatprep.subr.bf16.mxu0 %v2854
    %3376 = vmatpush1.bf16.msra.mxu0 %v2853
    %3377 = vmatprep.subr.bf16.mxu0 %v2847
    %3378 = vmatpush1.bf16.msra.mxu0 %v2846
    %3379 = vmatprep.subr.bf16.mxu0 %v2840
    %3380 = vmatpush1.bf16.msra.mxu0 %v2839
    %3381 = vmatprep.subr.bf16.mxu0 %v2833
    %3382 = vmatpush1.bf16.msra.mxu0 %v2832
    %3383 = vmatprep.subr.bf16.mxu0 %v2938
    %3384 = vmatpush2.bf16.msra.mxu0 %v2937
    %3385 = vmatprep.subr.bf16.mxu0 %v2931
    %3386 = vmatpush2.bf16.msra.mxu0 %v2930
    %3387 = vmatprep.subr.bf16.mxu0 %v2924
    %3388 = vmatpush2.bf16.msra.mxu0 %v2923
    %3389 = vmatprep.subr.bf16.mxu0 %v2917
    %3390 = vmatpush2.bf16.msra.mxu0 %v2916
    %3391 = vmatprep.subr.bf16.mxu0 %v2910
    %3392 = vmatpush2.bf16.msra.mxu0 %v2909
    %3393 = vmatprep.subr.bf16.mxu0 %v2903
    %3394 = vmatpush2.bf16.msra.mxu0 %v2902
    %3395 = vmatprep.subr.bf16.mxu0 %v2896
    %3396 = vmatpush2.bf16.msra.mxu0 %v2895
    %3397 = vmatprep.subr.bf16.mxu0 %v2889
    %3398 = vmatpush2.bf16.msra.mxu0 %v2888
    %3399 = vmatprep.mubr.bf16.mxu0 %v2053
    %3400 = vmatmul.mubr.bf16.gmra.mxu0 %v2052
    %v3401 = vpop.f32.mrf.mxu0
    %v3402 = vadd.f32 %v2273, %v3401
    %v3403 = vpop.f32.mrf.mxu0
    %v3404 = vadd.f32 %v2277, %v3403
    %v3405 = vpop.f32.mrf.mxu0
    %v3406 = vadd.f32 %v2273, %v3405
    %v3407 = vpop.f32.mrf.mxu0
    %v3408 = vadd.f32 %v2277, %v3407
    %3409 = vdwg.mxu0
    %3410 = vmatprep.subr.bf16.mxu0 %v2994
    %3411 = vmatpush1.bf16.msra.mxu0 %v2993
    %3412 = vmatprep.subr.bf16.mxu0 %v2987
    %3413 = vmatpush1.bf16.msra.mxu0 %v2986
    %3414 = vmatprep.subr.bf16.mxu0 %v2980
    %3415 = vmatpush1.bf16.msra.mxu0 %v2979
    %3416 = vmatprep.subr.bf16.mxu0 %v2973
    %3417 = vmatpush1.bf16.msra.mxu0 %v2972
    %3418 = vmatprep.subr.bf16.mxu0 %v2966
    %3419 = vmatpush1.bf16.msra.mxu0 %v2965
    %3420 = vmatprep.subr.bf16.mxu0 %v2959
    %3421 = vmatpush1.bf16.msra.mxu0 %v2958
    %3422 = vmatprep.subr.bf16.mxu0 %v2952
    %3423 = vmatpush1.bf16.msra.mxu0 %v2951
    %3424 = vmatprep.subr.bf16.mxu0 %v2945
    %3425 = vmatpush1.bf16.msra.mxu0 %v2944
    %3426 = vmatprep.subr.bf16.mxu0 0
    %3427 = vmatpush2.bf16.msra.mxu0 0
    %3428 = vmatprep.subr.bf16.mxu0 0
    %3429 = vmatpush2.bf16.msra.mxu0 0
    %3430 = vmatprep.subr.bf16.mxu0 0
    %3431 = vmatpush2.bf16.msra.mxu0 0
    %3432 = vmatprep.subr.bf16.mxu0 0
    %3433 = vmatpush2.bf16.msra.mxu0 0
    %3434 = vmatprep.subr.bf16.mxu0 0
    %3435 = vmatpush2.bf16.msra.mxu0 0
    %3436 = vmatprep.subr.bf16.mxu0 0
    %3437 = vmatpush2.bf16.msra.mxu0 0
    %3438 = vmatprep.subr.bf16.mxu0 0
    %3439 = vmatpush2.bf16.msra.mxu0 0
    %3440 = vmatprep.subr.bf16.mxu0 %v3190
    %3441 = vmatpush2.bf16.msra.mxu0 %v3187
    %3442 = vmatprep.mubr.bf16.mxu0 %v3172
    %3443 = vmatmul.mubr.bf16.gmra.mxu0 %v2054
    %v3444 = vpop.f32.mrf.mxu0
    %v3445 = vadd.f32 %v3402, %v3444
    %v3446 = vpop.f32.mrf.mxu0
    %v3447 = vadd.f32 %v3404, %v3446
    %v3448 = vpop.f32.mrf.mxu0
    %v3449 = vadd.f32 %v3406, %v3448
    %v3450 = vpop.f32.mrf.mxu0
    %v3451 = vadd.f32 %v3408, %v3450
    %3452 = vdwg.mxu0
    %3453 = vmatprep.subr.bf16.mxu0 0
    %3454 = vmatpush1.bf16.msra.mxu0 %v2883
    %3455 = vmatprep.subr.bf16.mxu0 0
    %3456 = vmatpush1.bf16.msra.mxu0 %v2876
    %3457 = vmatprep.subr.bf16.mxu0 0
    %3458 = vmatpush1.bf16.msra.mxu0 %v2869
    %3459 = vmatprep.subr.bf16.mxu0 0
    %3460 = vmatpush1.bf16.msra.mxu0 %v2862
    %3461 = vmatprep.subr.bf16.mxu0 0
    %3462 = vmatpush1.bf16.msra.mxu0 %v2855
    %3463 = vmatprep.subr.bf16.mxu0 0
    %3464 = vmatpush1.bf16.msra.mxu0 %v2848
    %3465 = vmatprep.subr.bf16.mxu0 0
    %3466 = vmatpush1.bf16.msra.mxu0 %v2841
    %3467 = vmatprep.subr.bf16.mxu0 0
    %3468 = vmatpush1.bf16.msra.mxu0 %v2834
    %3469 = vmatprep.subr.bf16.mxu0 0
    %3470 = vmatpush2.bf16.msra.mxu0 %v2939
    %3471 = vmatprep.subr.bf16.mxu0 0
    %3472 = vmatpush2.bf16.msra.mxu0 %v2932
    %3473 = vmatprep.subr.bf16.mxu0 0
    %3474 = vmatpush2.bf16.msra.mxu0 %v2925
    %3475 = vmatprep.subr.bf16.mxu0 0
    %3476 = vmatpush2.bf16.msra.mxu0 %v2918
    %3477 = vmatprep.subr.bf16.mxu0 0
    %3478 = vmatpush2.bf16.msra.mxu0 %v2911
    %3479 = vmatprep.subr.bf16.mxu0 0
    %3480 = vmatpush2.bf16.msra.mxu0 %v2904
    %3481 = vmatprep.subr.bf16.mxu0 0
    %3482 = vmatpush2.bf16.msra.mxu0 %v2897
    %3483 = vmatprep.subr.bf16.mxu0 0
    %3484 = vmatpush2.bf16.msra.mxu0 %v2890
    %3485 = vmatprep.mubr.bf16.mxu0 %v2053
    %3486 = vmatmul.mubr.bf16.gmra.mxu0 %v2052
    %v3487 = vpop.f32.mrf.mxu0
    %v3488 = vadd.f32 %v2281, %v3487
    %v3489 = vpop.f32.mrf.mxu0
    %v3490 = vpop.f32.mrf.mxu0
    %v3491 = vadd.f32 %v2281, %v3490
    %v3492 = vpop.f32.mrf.mxu0
    %3493 = vdwg.mxu0
    %3494 = vmatprep.subr.bf16.mxu0 0
    %3495 = vmatpush1.bf16.msra.mxu0 %v2995
    %3496 = vmatprep.subr.bf16.mxu0 0
    %3497 = vmatpush1.bf16.msra.mxu0 %v2988
    %3498 = vmatprep.subr.bf16.mxu0 0
    %3499 = vmatpush1.bf16.msra.mxu0 %v2981
    %3500 = vmatprep.subr.bf16.mxu0 0
    %3501 = vmatpush1.bf16.msra.mxu0 %v2974
    %3502 = vmatprep.subr.bf16.mxu0 0
    %3503 = vmatpush1.bf16.msra.mxu0 %v2967
    %3504 = vmatprep.subr.bf16.mxu0 0
    %3505 = vmatpush1.bf16.msra.mxu0 %v2960
    %3506 = vmatprep.subr.bf16.mxu0 0
    %3507 = vmatpush1.bf16.msra.mxu0 %v2953
    %3508 = vmatprep.subr.bf16.mxu0 0
    %3509 = vmatpush1.bf16.msra.mxu0 %v2946
    %3510 = vmatprep.subr.bf16.mxu0 0
    %3511 = vmatpush2.bf16.msra.mxu0 0
    %3512 = vmatprep.subr.bf16.mxu0 0
    %3513 = vmatpush2.bf16.msra.mxu0 0
    %3514 = vmatprep.subr.bf16.mxu0 0
    %3515 = vmatpush2.bf16.msra.mxu0 0
    %3516 = vmatprep.subr.bf16.mxu0 0
    %3517 = vmatpush2.bf16.msra.mxu0 0
    %3518 = vmatprep.subr.bf16.mxu0 0
    %3519 = vmatpush2.bf16.msra.mxu0 0
    %3520 = vmatprep.subr.bf16.mxu0 0
    %3521 = vmatpush2.bf16.msra.mxu0 0
    %3522 = vmatprep.subr.bf16.mxu0 0
    %3523 = vmatpush2.bf16.msra.mxu0 0
    %3524 = vmatprep.subr.bf16.mxu0 0
    %3525 = vmatpush2.bf16.msra.mxu0 %v3193
    %3526 = vmatprep.mubr.bf16.mxu0 %v3172
    %3527 = vmatmul.mubr.bf16.gmra.mxu0 %v2054
    %v3528 = vpop.f32.mrf.mxu0
    %v3529 = vadd.f32 %v3488, %v3528
    %v3530 = vpop.f32.mrf.mxu0
    %v3531 = vpop.f32.mrf.mxu0
    %v3532 = vadd.f32 %v3491, %v3531
    %v3533 = vpop.f32.mrf.mxu0
    %3534 = vdwg.mxu0
    %v3535 = vmul.f32 %v3273, 0.5
    %v3536 = vmul.f32 %v3275, 0.5
    %v3537 = vmul.f32 %v3359, 0.5
    %v3538 = vmul.f32 %v3361, 0.5
    %v3539 = vmul.f32 %v3445, 0.5
    %v3540 = vmul.f32 %v3447, 0.5
    %v3541 = vmul.f32 %v3529, 0.5
    %v3542 = vmul.f32 %v3277, 0.5
    %v3543 = vmul.f32 %v3279, 0.5
    %v3544 = vmul.f32 %v3363, 0.5
    %v3545 = vmul.f32 %v3365, 0.5
    %v3546 = vmul.f32 %v3449, 0.5
    %v3547 = vmul.f32 %v3451, 0.5
    %v3548 = vmul.f32 %v3532, 0.5
    %v3549 = vtanh.pop %v3535
    %v3550 = vtanh.pop %v3536
    %v3551 = vtanh.pop %v3537
    %v3552 = vtanh.pop %v3538
    %v3553 = vtanh.pop %v3539
    %v3554 = vtanh.pop %v3540
    %v3555 = vtanh.pop %v3541
    %v3556 = vtanh.pop %v3542
    %v3557 = vtanh.pop %v3543
    %v3558 = vtanh.pop %v3544
    %v3559 = vtanh.pop %v3545
    %v3560 = vtanh.pop %v3546
    %v3561 = vtanh.pop %v3547
    %v3562 = vtanh.pop %v3548
    %v3563 = vmul.f32 %v3549, 0.5
    %v3564 = vmul.f32 %v3550, 0.5
    %v3565 = vmul.f32 %v3551, 0.5
    %v3566 = vmul.f32 %v3552, 0.5
    %v3567 = vmul.f32 %v3553, 0.5
    %v3568 = vmul.f32 %v3554, 0.5
    %v3569 = vmul.f32 %v3555, 0.5
    %v3570 = vmul.f32 %v3556, 0.5
    %v3571 = vmul.f32 %v3557, 0.5
    %v3572 = vmul.f32 %v3558, 0.5
    %v3573 = vmul.f32 %v3559, 0.5
    %v3574 = vmul.f32 %v3560, 0.5
    %v3575 = vmul.f32 %v3561, 0.5
    %v3576 = vmul.f32 %v3562, 0.5
    %v3577 = vadd.f32 %v3563, 0.5
    %v3578 = vadd.f32 %v3564, 0.5
    %v3579 = vadd.f32 %v3565, 0.5
    %v3580 = vadd.f32 %v3566, 0.5
    %v3581 = vadd.f32 %v3567, 0.5
    %v3582 = vadd.f32 %v3568, 0.5
    %v3583 = vadd.f32 %v3569, 0.5
    %v3584 = vadd.f32 %v3570, 0.5
    %v3585 = vadd.f32 %v3571, 0.5
    %v3586 = vadd.f32 %v3572, 0.5
    %v3587 = vadd.f32 %v3573, 0.5
    %v3588 = vadd.f32 %v3574, 0.5
    %v3589 = vadd.f32 %v3575, 0.5
    %v3590 = vadd.f32 %v3576, 0.5
    %3591 = vst [vmem:[#allocation2] sm:$0xff] %v3577
    %3592 = vst [vmem:[#allocation2 + $0x8] sm:$0xff] %v3578
    %3593 = vst [vmem:[#allocation2 + $0x10] sm:$0xff] %v3579
    %3594 = vst [vmem:[#allocation2 + $0x18] sm:$0xff] %v3580
    %3595 = vst [vmem:[#allocation2 + $0x20] sm:$0xff] %v3581
    %3596 = vst [vmem:[#allocation2 + $0x28] sm:$0xff] %v3582
    %3597 = vst.msk [vmem:[#allocation2 + $0x30] sm:$0xff] %vm1253, %v3583
    %3598 = vst [vmem:[#allocation2 + $0x38] sm:$0xff] %v3584
    %3599 = vst [vmem:[#allocation2 + $0x40] sm:$0xff] %v3585
    %3600 = vst [vmem:[#allocation2 + $0x48] sm:$0xff] %v3586
    %3601 = vst [vmem:[#allocation2 + $0x50] sm:$0xff] %v3587
    %3602 = vst [vmem:[#allocation2 + $0x58] sm:$0xff] %v3588
    %3603 = vst [vmem:[#allocation2 + $0x60] sm:$0xff] %v3589
    %3604 = vst.msk [vmem:[#allocation2 + $0x68] sm:$0xff] %vm1253, %v3590
    // Predicated region
    $region38: #{autoencoder_mlp4.1} parent=1 // pred_check
      _
    $region39: #{autoencoder_mlp4.1} parent=1 // pred_check_branch
      %3606 = sbr.rel (0) target = $region41
    $region40: #{autoencoder_mlp4.1} parent=1 // pred_region
      %s3608 = ssub.s32 1792, 1792
      %3609 = vsyncadd [#allocation3], %s3608
      %s3610 = sshll.u32 [#allocation2], 4
      %s3611 = int_to_ptr.vmem [resolvable:$true] %s3610
      %3616 = dma.vmem_to_hbm [thread:$0]  %s3611, 1792, %s9, [#allocation3], 896, 896, 56
    $region41: #{autoencoder_mlp4.1} parent=1 // pred_fallthru
      _
    // Predicated region
    $region42: #{autoencoder_mlp4.1} parent=1 // pred_check
      _
    $region43: #{autoencoder_mlp4.1} parent=1 // pred_check_branch
      %3618 = sbr.rel (0) target = $region45
    $region44: #{autoencoder_mlp4.1} parent=1 // pred_region
      %3619 = dma.done [#allocation3], 1792
    $region45: #{autoencoder_mlp4.1} parent=1 // pred_fallthru
      _
    %3620 = vsyncpa [#allocation3], 1

</llo_original>
